<compile_context>
chip_gen: v6e
topology: v6e:2x2x1
jax: 0.10.0
libtpu: 0.0.40
codegen_flags: <defaults>
</compile_context>

<pallas_src>
import functools

import jax
import jax.numpy as jnp
from jax.experimental import pallas as pl
from jax.experimental.pallas import tpu as pltpu

B, S, D, H, DFF = 2, 8, 32, 4, 64     # batch, seq, d_model, heads, ffn hidden
DK = D // H
EPS = 1e-6
SCALE = 1.0 / float(DK) ** 0.5
NEG_INF = -1e9


def _layernorm(x, g, b):
    # Annotated-transformer LayerNorm: unbiased std (n-1), eps added to std.
    mean = jnp.mean(x, axis=-1, keepdims=True)
    diff = x - mean
    var = jnp.sum(diff * diff, axis=-1, keepdims=True) / (x.shape[-1] - 1)
    return g * diff / (jnp.sqrt(var) + EPS) + b


def encoder_layer_kernel(x_ref, bias_ref, pvec_ref,
                         wqkv_ref, wo_ref, w1_ref, w2_ref, o_ref):
    x = x_ref[0]                     # (R, D)  rows handled this grid step
    bias = bias_ref[0]               # (R, R)  additive mask (0 / -1e9)
    R = x.shape[0]

    pv = pvec_ref[...]               # (8, 128) packed small params
    ln1_g, ln1_b = pv[0, :D], pv[1, :D]
    b_qkv, bo = pv[2, :3 * D], pv[3, :D]
    ln2_g, ln2_b = pv[4, :D], pv[5, :D]
    b1, b2 = pv[6, :DFF], pv[7, :D]

    # ---- sublayer 0: x + self_attn(LayerNorm(x)) ----
    xn = _layernorm(x, ln1_g, ln1_b)
    qkv = jnp.dot(xn, wqkv_ref[...],
                  preferred_element_type=jnp.float32) + b_qkv       # (R, 3D)

    # All-head scores stacked along sublanes -> single masked softmax.
    scores = jnp.concatenate(
        [jnp.einsum('qd,kd->qk',
                    qkv[:, h * DK:(h + 1) * DK],
                    qkv[:, D + h * DK:D + (h + 1) * DK],
                    preferred_element_type=jnp.float32)
         for h in range(H)], axis=0)                                 # (H*R, R)
    s = scores * SCALE + jnp.concatenate([bias] * H, axis=0)
    s = s - jnp.max(s, axis=-1, keepdims=True)
    p = jnp.exp(s)
    p = p * pl.reciprocal(jnp.sum(p, axis=-1, keepdims=True), approx=True)

    # concat_h(p_h @ v_h), then a single matmul against the full Wo.
    o = jnp.concatenate(
        [jnp.dot(p[h * R:(h + 1) * R, :],
                 qkv[:, 2 * D + h * DK:2 * D + (h + 1) * DK],
                 preferred_element_type=jnp.float32)
         for h in range(H)], axis=-1)                                # (R, D)
    # TODO(synk): dropout is identity (eval mode / p = 0).
    x1 = x + jnp.dot(o, wo_ref[...], preferred_element_type=jnp.float32) + bo

    # ---- sublayer 1: x1 + FFN(LayerNorm(x1)) ----
    xn2 = _layernorm(x1, ln2_g, ln2_b)
    hdn = jnp.maximum(
        jnp.dot(xn2, w1_ref[...], preferred_element_type=jnp.float32) + b1, 0.0)
    o_ref[0] = x1 + jnp.dot(hdn, w2_ref[...],
                            preferred_element_type=jnp.float32) + b2


def _num_batch_blocks():
    """v7x has 2 TensorCores/chip -> keep B split across a parallel grid;
    v5e/v6e have a single TC -> fold both batch elements into one step."""
    try:
        kind = jax.devices()[0].device_kind.lower()
    except Exception:
        return 1
    if 'v7' in kind or '7x' in kind:
        return min(B, 2)
    return 1


@functools.partial(jax.jit, static_argnames=('nb',))
def encoder_layer(x, mask, params, *, nb=1):
    p = params
    bb = B // nb                      # batch elements folded per grid step
    r = bb * S                        # rows per grid step

    # ---- pack the 8 small vectors into one lane-dense (8, 128) slab ----
    def row(v):
        v = v.reshape(-1).astype(jnp.float32)
        return jnp.pad(v, (0, 128 - v.shape[0]))
    b_qkv = jnp.concatenate([p['bq'], p['bk'], p['bv']], axis=-1)
    pvec = jnp.stack([row(p['ln1_g']), row(p['ln1_b']), row(b_qkv), row(p['bo']),
                      row(p['ln2_g']), row(p['ln2_b']), row(p['b1']), row(p['b2'])])

    w_qkv = jnp.concatenate([p['wq'], p['wk'], p['wv']], axis=-1)    # (D, 3D)

    # ---- additive attention bias, block-diagonal over folded batches ----
    # (masked and cross-batch keys get -1e9 -> exp underflows to exactly 0)
    neg = jnp.where(mask == 0.0, jnp.float32(NEG_INF), jnp.float32(0.0))
    neg = neg.reshape(nb, bb, S, S)
    same_b = jnp.eye(bb, dtype=jnp.bool_)[None, :, None, :, None]
    bias = jnp.where(same_b, neg[:, :, :, None, :], jnp.float32(NEG_INF))
    bias = bias.reshape(nb, r, r)

    xr = x.reshape(nb, r, D)

    out = pl.pallas_call(
        encoder_layer_kernel,
        out_shape=jax.ShapeDtypeStruct((nb, r, D), jnp.float32),
        grid_spec=pltpu.PrefetchScalarGridSpec(
            num_scalar_prefetch=0,
            grid=(nb,),
            in_specs=[pl.BlockSpec((1, r, D), lambda i: (i, 0, 0)),
                      pl.BlockSpec((1, r, r), lambda i: (i, 0, 0)),
                      pl.BlockSpec((8, 128), lambda i: (0, 0)),
                      pl.BlockSpec((D, 3 * D), lambda i: (0, 0)),
                      pl.BlockSpec((D, D), lambda i: (0, 0)),
                      pl.BlockSpec((D, DFF), lambda i: (0, 0)),
                      pl.BlockSpec((DFF, D), lambda i: (0, 0))],
            out_specs=pl.BlockSpec((1, r, D), lambda i: (i, 0, 0)),
        ),
        compiler_params=pltpu.CompilerParams(
            dimension_semantics=("parallel",)),
    )(xr, bias, pvec, w_qkv, p['wo'], p['w1'], p['w2'])
    return out.reshape(B, S, D)


# ------------------------- pure-JAX reference -------------------------
def reference(x, mask, p):
    def ln(v, g, b):
        mean = v.mean(-1, keepdims=True)
        diff = v - mean
        var = (diff ** 2).sum(-1, keepdims=True) / (v.shape[-1] - 1)
        return g * diff / (jnp.sqrt(var) + EPS) + b

    xn = ln(x, p['ln1_g'][0], p['ln1_b'][0])
    q = xn @ p['wq'] + p['bq'][0]
    k = xn @ p['wk'] + p['bk'][0]
    v = xn @ p['wv'] + p['bv'][0]

    def split(t):  # (B,S,D) -> (B,H,S,DK)
        return t.reshape(B, S, H, DK).transpose(0, 2, 1, 3)

    qh, kh, vh = split(q), split(k), split(v)
    scores = jnp.einsum('bhqd,bhkd->bhqk', qh, kh) / jnp.sqrt(jnp.float32(DK))
    scores = jnp.where(mask[:, None, :, :] == 0.0, -1e9, scores)
    probs = jax.nn.softmax(scores, axis=-1)
    o = jnp.einsum('bhqk,bhkd->bhqd', probs, vh)
    o = o.transpose(0, 2, 1, 3).reshape(B, S, D)
    x1 = x + (o @ p['wo'] + p['bo'][0])

    xn2 = ln(x1, p['ln2_g'][0], p['ln2_b'][0])
    ff = jnp.maximum(xn2 @ p['w1'] + p['b1'][0], 0.0) @ p['w2'] + p['b2'][0]
    return x1 + ff


# ----------------------------- main ------------------------------------
if __name__ == "__main__":
    key = jax.random.PRNGKey(0)
    keys = jax.random.split(key, 13)

    def w(k, shape, scale=0.02):
        return (scale * jax.random.normal(k, shape)).astype(jnp.float32)

    params = {
        'ln1_g': jnp.ones((1, D), jnp.float32),
        'ln1_b': jnp.zeros((1, D), jnp.float32),
        'wq': w(keys[0], (D, D)), 'bq': w(keys[1], (1, D)),
        'wk': w(keys[2], (D, D)), 'bk': w(keys[3], (1, D)),
        'wv': w(keys[4], (D, D)), 'bv': w(keys[5], (1, D)),
        'wo': w(keys[6], (D, D)), 'bo': w(keys[7], (1, D)),
        'ln2_g': jnp.ones((1, D), jnp.float32),
        'ln2_b': jnp.zeros((1, D), jnp.float32),
        'w1': w(keys[8], (D, DFF)), 'b1': w(keys[9], (1, DFF)),
        'w2': w(keys[10], (DFF, D)), 'b2': w(keys[11], (1, D)),
    }

    x = jax.random.normal(keys[12], (B, S, D), jnp.float32)
    mask = jnp.ones((B, S, S), jnp.float32)
    mask = mask.at[1, :, 6:].set(0.0)      # mask out last 2 keys for batch 1

    nb = _num_batch_blocks()
    out = encoder_layer(x, mask, params, nb=nb)
    out = jax.block_until_ready(out)

    ref = reference(x, mask, params)
    assert out.shape == (B, S, D)
    max_err = float(jnp.max(jnp.abs(out - ref)))
    assert jnp.allclose(out, ref, atol=1e-3, rtol=1e-3), max_err

    print("KERNEL_OK")
</pallas_src>

<mosaic_0001>
module attributes {stable_mosaic.version = 11 : i64} {
  func.func @encoder_layer_kernel(%arg0: i32, %arg1: memref<1x16x32xf32, #tpu.memory_space<vmem>>, %arg2: memref<1x16x16xf32, #tpu.memory_space<vmem>>, %arg3: memref<8x128xf32, #tpu.memory_space<vmem>>, %arg4: memref<32x96xf32, #tpu.memory_space<vmem>>, %arg5: memref<32x32xf32, #tpu.memory_space<vmem>>, %arg6: memref<32x64xf32, #tpu.memory_space<vmem>>, %arg7: memref<64x32xf32, #tpu.memory_space<vmem>>, %arg8: memref<1x16x32xf32, #tpu.memory_space<vmem>>) attributes {dimension_semantics = [#tpu.dimension_semantics<parallel>], iteration_bounds = array<i64: 1>, scalar_prefetch = 0 : i64, scratch_operands = 0 : i64, tpu.core_type = #tpu.core_type<tc>, window_params = [{transform_indices = @transform_0, window_bounds = array<i64: 1, 16, 32>}, {transform_indices = @transform_1, window_bounds = array<i64: 1, 16, 16>}, {pipeline_mode = #tpu.pipeline_mode<synchronous>, transform_indices = @transform_2, window_bounds = array<i64: 8, 128>}, {pipeline_mode = #tpu.pipeline_mode<synchronous>, transform_indices = @transform_3, window_bounds = array<i64: 32, 96>}, {pipeline_mode = #tpu.pipeline_mode<synchronous>, transform_indices = @transform_4, window_bounds = array<i64: 32, 32>}, {pipeline_mode = #tpu.pipeline_mode<synchronous>, transform_indices = @transform_5, window_bounds = array<i64: 32, 64>}, {pipeline_mode = #tpu.pipeline_mode<synchronous>, transform_indices = @transform_6, window_bounds = array<i64: 64, 32>}, {transform_indices = @transform_7, window_bounds = array<i64: 1, 16, 32>}]} {
    %c0 = arith.constant 0 : index
    %c0_0 = arith.constant 0 : index
    %c0_1 = arith.constant 0 : index
    %0 = vector.load %arg1[%c0, %c0_0, %c0_1] : memref<1x16x32xf32, #tpu.memory_space<vmem>>, vector<1x16x32xf32>
    %1 = vector.shape_cast %0 : vector<1x16x32xf32> to vector<16x32xf32>
    %c0_2 = arith.constant 0 : index
    %c0_3 = arith.constant 0 : index
    %c0_4 = arith.constant 0 : index
    %2 = vector.load %arg2[%c0_2, %c0_3, %c0_4] : memref<1x16x16xf32, #tpu.memory_space<vmem>>, vector<1x16x16xf32>
    %3 = vector.shape_cast %2 : vector<1x16x16xf32> to vector<16x16xf32>
    %c0_5 = arith.constant 0 : index
    %c0_6 = arith.constant 0 : index
    %4 = vector.load %arg3[%c0_5, %c0_6] : memref<8x128xf32, #tpu.memory_space<vmem>>, vector<8x128xf32>
    %5 = vector.extract_strided_slice %4 {offsets = [0, 0], sizes = [1, 32], strides = [1, 1]} : vector<8x128xf32> to vector<1x32xf32>
    %6 = vector.shape_cast %5 : vector<1x32xf32> to vector<32xf32>
    %7 = vector.extract_strided_slice %4 {offsets = [1, 0], sizes = [1, 32], strides = [1, 1]} : vector<8x128xf32> to vector<1x32xf32>
    %8 = vector.shape_cast %7 : vector<1x32xf32> to vector<32xf32>
    %9 = vector.extract_strided_slice %4 {offsets = [2, 0], sizes = [1, 96], strides = [1, 1]} : vector<8x128xf32> to vector<1x96xf32>
    %10 = vector.shape_cast %9 : vector<1x96xf32> to vector<96xf32>
    %11 = vector.extract_strided_slice %4 {offsets = [3, 0], sizes = [1, 32], strides = [1, 1]} : vector<8x128xf32> to vector<1x32xf32>
    %12 = vector.shape_cast %11 : vector<1x32xf32> to vector<32xf32>
    %13 = vector.extract_strided_slice %4 {offsets = [4, 0], sizes = [1, 32], strides = [1, 1]} : vector<8x128xf32> to vector<1x32xf32>
    %14 = vector.shape_cast %13 : vector<1x32xf32> to vector<32xf32>
    %15 = vector.extract_strided_slice %4 {offsets = [5, 0], sizes = [1, 32], strides = [1, 1]} : vector<8x128xf32> to vector<1x32xf32>
    %16 = vector.shape_cast %15 : vector<1x32xf32> to vector<32xf32>
    %17 = vector.extract_strided_slice %4 {offsets = [6, 0], sizes = [1, 64], strides = [1, 1]} : vector<8x128xf32> to vector<1x64xf32>
    %18 = vector.shape_cast %17 : vector<1x64xf32> to vector<64xf32>
    %19 = vector.extract_strided_slice %4 {offsets = [7, 0], sizes = [1, 32], strides = [1, 1]} : vector<8x128xf32> to vector<1x32xf32>
    %20 = vector.shape_cast %19 : vector<1x32xf32> to vector<32xf32>
    %cst = arith.constant dense<0.000000e+00> : vector<16xf32>
    %21 = vector.multi_reduction <add>, %1, %cst [1] : vector<16x32xf32> to vector<16xf32>
    %22 = vector.shape_cast %21 : vector<16xf32> to vector<16x1xf32>
    %cst_7 = arith.constant 3.200000e+01 : f32
    %23 = vector.broadcast %cst_7 : f32 to vector<16x1xf32>
    %24 = arith.divf %22, %23 : vector<16x1xf32>
    %25 = vector.broadcast %24 : vector<16x1xf32> to vector<16x32xf32>
    %26 = arith.subf %1, %25 : vector<16x32xf32>
    %27 = arith.mulf %26, %26 : vector<16x32xf32>
    %cst_8 = arith.constant dense<0.000000e+00> : vector<16xf32>
    %28 = vector.multi_reduction <add>, %27, %cst_8 [1] : vector<16x32xf32> to vector<16xf32>
    %29 = vector.shape_cast %28 : vector<16xf32> to vector<16x1xf32>
    %cst_9 = arith.constant 3.100000e+01 : f32
    %30 = vector.broadcast %cst_9 : f32 to vector<16x1xf32>
    %31 = arith.divf %29, %30 : vector<16x1xf32>
    %32 = vector.shape_cast %6 : vector<32xf32> to vector<1x32xf32>
    %33 = vector.broadcast %32 : vector<1x32xf32> to vector<16x32xf32>
    %34 = arith.mulf %33, %26 : vector<16x32xf32>
    %35 = math.sqrt %31 : vector<16x1xf32>
    %cst_10 = arith.constant 9.99999997E-7 : f32
    %36 = vector.broadcast %cst_10 : f32 to vector<16x1xf32>
    %37 = arith.addf %35, %36 : vector<16x1xf32>
    %38 = vector.broadcast %37 : vector<16x1xf32> to vector<16x32xf32>
    %39 = arith.divf %34, %38 : vector<16x32xf32>
    %40 = vector.shape_cast %8 : vector<32xf32> to vector<1x32xf32>
    %41 = vector.broadcast %40 : vector<1x32xf32> to vector<16x32xf32>
    %42 = arith.addf %39, %41 : vector<16x32xf32>
    %c0_11 = arith.constant 0 : index
    %c0_12 = arith.constant 0 : index
    %43 = vector.load %arg4[%c0_11, %c0_12] : memref<32x96xf32, #tpu.memory_space<vmem>>, vector<32x96xf32>
    %cst_13 = arith.constant dense<0.000000e+00> : vector<16x96xf32>
    %44 = tpu.matmul %42, %43, %cst_13 {dimension_numbers = #tpu.dot_dimension_numbers<[1], [0], [0], [1], [0, 0, 1, 1], [], []>} : vector<16x32xf32>, vector<32x96xf32>, vector<16x96xf32> -> vector<16x96xf32>
    %45 = vector.shape_cast %10 : vector<96xf32> to vector<1x96xf32>
    %46 = vector.broadcast %45 : vector<1x96xf32> to vector<16x96xf32>
    %47 = arith.addf %44, %46 : vector<16x96xf32>
    %48 = vector.extract_strided_slice %47 {offsets = [0, 0], sizes = [16, 8], strides = [1, 1]} : vector<16x96xf32> to vector<16x8xf32>
    %49 = vector.extract_strided_slice %47 {offsets = [0, 32], sizes = [16, 8], strides = [1, 1]} : vector<16x96xf32> to vector<16x8xf32>
    "tpu.trace_start"() <{level = 10 : i32, message = "qd,kd->qk"}> : () -> ()
    %cst_14 = arith.constant dense<0.000000e+00> : vector<16x16xf32>
    %50 = tpu.matmul %48, %49, %cst_14 {dimension_numbers = #tpu.dot_dimension_numbers<[1], [1], [0], [0], [0, 0, 1, 0], [], []>} : vector<16x8xf32>, vector<16x8xf32>, vector<16x16xf32> -> vector<16x16xf32>
    "tpu.trace_stop"() : () -> ()
    %51 = vector.extract_strided_slice %47 {offsets = [0, 8], sizes = [16, 8], strides = [1, 1]} : vector<16x96xf32> to vector<16x8xf32>
    %52 = vector.extract_strided_slice %47 {offsets = [0, 40], sizes = [16, 8], strides = [1, 1]} : vector<16x96xf32> to vector<16x8xf32>
    "tpu.trace_start"() <{level = 10 : i32, message = "qd,kd->qk"}> : () -> ()
    %cst_15 = arith.constant dense<0.000000e+00> : vector<16x16xf32>
    %53 = tpu.matmul %51, %52, %cst_15 {dimension_numbers = #tpu.dot_dimension_numbers<[1], [1], [0], [0], [0, 0, 1, 0], [], []>} : vector<16x8xf32>, vector<16x8xf32>, vector<16x16xf32> -> vector<16x16xf32>
    "tpu.trace_stop"() : () -> ()
    %54 = vector.extract_strided_slice %47 {offsets = [0, 16], sizes = [16, 8], strides = [1, 1]} : vector<16x96xf32> to vector<16x8xf32>
    %55 = vector.extract_strided_slice %47 {offsets = [0, 48], sizes = [16, 8], strides = [1, 1]} : vector<16x96xf32> to vector<16x8xf32>
    "tpu.trace_start"() <{level = 10 : i32, message = "qd,kd->qk"}> : () -> ()
    %cst_16 = arith.constant dense<0.000000e+00> : vector<16x16xf32>
    %56 = tpu.matmul %54, %55, %cst_16 {dimension_numbers = #tpu.dot_dimension_numbers<[1], [1], [0], [0], [0, 0, 1, 0], [], []>} : vector<16x8xf32>, vector<16x8xf32>, vector<16x16xf32> -> vector<16x16xf32>
    "tpu.trace_stop"() : () -> ()
    %57 = vector.extract_strided_slice %47 {offsets = [0, 24], sizes = [16, 8], strides = [1, 1]} : vector<16x96xf32> to vector<16x8xf32>
    %58 = vector.extract_strided_slice %47 {offsets = [0, 56], sizes = [16, 8], strides = [1, 1]} : vector<16x96xf32> to vector<16x8xf32>
    "tpu.trace_start"() <{level = 10 : i32, message = "qd,kd->qk"}> : () -> ()
    %cst_17 = arith.constant dense<0.000000e+00> : vector<16x16xf32>
    %59 = tpu.matmul %57, %58, %cst_17 {dimension_numbers = #tpu.dot_dimension_numbers<[1], [1], [0], [0], [0, 0, 1, 0], [], []>} : vector<16x8xf32>, vector<16x8xf32>, vector<16x16xf32> -> vector<16x16xf32>
    "tpu.trace_stop"() : () -> ()
    %60 = tpu.concatenate %50, %53, %56, %59 in 0 : vector<16x16xf32>, vector<16x16xf32>, vector<16x16xf32>, vector<16x16xf32> -> vector<64x16xf32>
    %cst_18 = arith.constant 0.353553385 : f32
    %61 = vector.broadcast %cst_18 : f32 to vector<64x16xf32>
    %62 = arith.mulf %60, %61 : vector<64x16xf32>
    %63 = tpu.concatenate %3, %3, %3, %3 in 0 : vector<16x16xf32>, vector<16x16xf32>, vector<16x16xf32>, vector<16x16xf32> -> vector<64x16xf32>
    %64 = arith.addf %62, %63 : vector<64x16xf32>
    %cst_19 = arith.constant dense<0xFF800000> : vector<64xf32>
    %65 = vector.multi_reduction <maximumf>, %64, %cst_19 [1] : vector<64x16xf32> to vector<64xf32>
    %66 = vector.shape_cast %65 : vector<64xf32> to vector<64x1xf32>
    %67 = vector.broadcast %66 : vector<64x1xf32> to vector<64x16xf32>
    %68 = arith.subf %64, %67 : vector<64x16xf32>
    %69 = math.exp %68 : vector<64x16xf32>
    %cst_20 = arith.constant dense<0.000000e+00> : vector<64xf32>
    %70 = vector.multi_reduction <add>, %69, %cst_20 [1] : vector<64x16xf32> to vector<64xf32>
    %71 = vector.shape_cast %70 : vector<64xf32> to vector<64x1xf32>
    %72 = tpu.reciprocal %71 {approx = true} : vector<64x1xf32> -> vector<64x1xf32>
    %73 = vector.broadcast %72 : vector<64x1xf32> to vector<64x16xf32>
    %74 = arith.mulf %69, %73 : vector<64x16xf32>
    %75 = vector.extract_strided_slice %74 {offsets = [0, 0], sizes = [16, 16], strides = [1, 1]} : vector<64x16xf32> to vector<16x16xf32>
    %76 = vector.extract_strided_slice %47 {offsets = [0, 64], sizes = [16, 8], strides = [1, 1]} : vector<16x96xf32> to vector<16x8xf32>
    %cst_21 = arith.constant dense<0.000000e+00> : vector<16x8xf32>
    %77 = tpu.matmul %75, %76, %cst_21 {dimension_numbers = #tpu.dot_dimension_numbers<[1], [0], [0], [1], [0, 0, 1, 1], [], []>} : vector<16x16xf32>, vector<16x8xf32>, vector<16x8xf32> -> vector<16x8xf32>
    %78 = vector.extract_strided_slice %74 {offsets = [16, 0], sizes = [16, 16], strides = [1, 1]} : vector<64x16xf32> to vector<16x16xf32>
    %79 = vector.extract_strided_slice %47 {offsets = [0, 72], sizes = [16, 8], strides = [1, 1]} : vector<16x96xf32> to vector<16x8xf32>
    %cst_22 = arith.constant dense<0.000000e+00> : vector<16x8xf32>
    %80 = tpu.matmul %78, %79, %cst_22 {dimension_numbers = #tpu.dot_dimension_numbers<[1], [0], [0], [1], [0, 0, 1, 1], [], []>} : vector<16x16xf32>, vector<16x8xf32>, vector<16x8xf32> -> vector<16x8xf32>
    %81 = vector.extract_strided_slice %74 {offsets = [32, 0], sizes = [16, 16], strides = [1, 1]} : vector<64x16xf32> to vector<16x16xf32>
    %82 = vector.extract_strided_slice %47 {offsets = [0, 80], sizes = [16, 8], strides = [1, 1]} : vector<16x96xf32> to vector<16x8xf32>
    %cst_23 = arith.constant dense<0.000000e+00> : vector<16x8xf32>
    %83 = tpu.matmul %81, %82, %cst_23 {dimension_numbers = #tpu.dot_dimension_numbers<[1], [0], [0], [1], [0, 0, 1, 1], [], []>} : vector<16x16xf32>, vector<16x8xf32>, vector<16x8xf32> -> vector<16x8xf32>
    %84 = vector.extract_strided_slice %74 {offsets = [48, 0], sizes = [16, 16], strides = [1, 1]} : vector<64x16xf32> to vector<16x16xf32>
    %85 = vector.extract_strided_slice %47 {offsets = [0, 88], sizes = [16, 8], strides = [1, 1]} : vector<16x96xf32> to vector<16x8xf32>
    %cst_24 = arith.constant dense<0.000000e+00> : vector<16x8xf32>
    %86 = tpu.matmul %84, %85, %cst_24 {dimension_numbers = #tpu.dot_dimension_numbers<[1], [0], [0], [1], [0, 0, 1, 1], [], []>} : vector<16x16xf32>, vector<16x8xf32>, vector<16x8xf32> -> vector<16x8xf32>
    %87 = tpu.concatenate %77, %80, %83, %86 in 1 : vector<16x8xf32>, vector<16x8xf32>, vector<16x8xf32>, vector<16x8xf32> -> vector<16x32xf32>
    %c0_25 = arith.constant 0 : index
    %c0_26 = arith.constant 0 : index
    %88 = vector.load %arg5[%c0_25, %c0_26] : memref<32x32xf32, #tpu.memory_space<vmem>>, vector<32x32xf32>
    %cst_27 = arith.constant dense<0.000000e+00> : vector<16x32xf32>
    %89 = tpu.matmul %87, %88, %cst_27 {dimension_numbers = #tpu.dot_dimension_numbers<[1], [0], [0], [1], [0, 0, 1, 1], [], []>} : vector<16x32xf32>, vector<32x32xf32>, vector<16x32xf32> -> vector<16x32xf32>
    %90 = arith.addf %1, %89 : vector<16x32xf32>
    %91 = vector.shape_cast %12 : vector<32xf32> to vector<1x32xf32>
    %92 = vector.broadcast %91 : vector<1x32xf32> to vector<16x32xf32>
    %93 = arith.addf %90, %92 : vector<16x32xf32>
    %cst_28 = arith.constant dense<0.000000e+00> : vector<16xf32>
    %94 = vector.multi_reduction <add>, %93, %cst_28 [1] : vector<16x32xf32> to vector<16xf32>
    %95 = vector.shape_cast %94 : vector<16xf32> to vector<16x1xf32>
    %cst_29 = arith.constant 3.200000e+01 : f32
    %96 = vector.broadcast %cst_29 : f32 to vector<16x1xf32>
    %97 = arith.divf %95, %96 : vector<16x1xf32>
    %98 = vector.broadcast %97 : vector<16x1xf32> to vector<16x32xf32>
    %99 = arith.subf %93, %98 : vector<16x32xf32>
    %100 = arith.mulf %99, %99 : vector<16x32xf32>
    %cst_30 = arith.constant dense<0.000000e+00> : vector<16xf32>
    %101 = vector.multi_reduction <add>, %100, %cst_30 [1] : vector<16x32xf32> to vector<16xf32>
    %102 = vector.shape_cast %101 : vector<16xf32> to vector<16x1xf32>
    %cst_31 = arith.constant 3.100000e+01 : f32
    %103 = vector.broadcast %cst_31 : f32 to vector<16x1xf32>
    %104 = arith.divf %102, %103 : vector<16x1xf32>
    %105 = vector.shape_cast %14 : vector<32xf32> to vector<1x32xf32>
    %106 = vector.broadcast %105 : vector<1x32xf32> to vector<16x32xf32>
    %107 = arith.mulf %106, %99 : vector<16x32xf32>
    %108 = math.sqrt %104 : vector<16x1xf32>
    %cst_32 = arith.constant 9.99999997E-7 : f32
    %109 = vector.broadcast %cst_32 : f32 to vector<16x1xf32>
    %110 = arith.addf %108, %109 : vector<16x1xf32>
    %111 = vector.broadcast %110 : vector<16x1xf32> to vector<16x32xf32>
    %112 = arith.divf %107, %111 : vector<16x32xf32>
    %113 = vector.shape_cast %16 : vector<32xf32> to vector<1x32xf32>
    %114 = vector.broadcast %113 : vector<1x32xf32> to vector<16x32xf32>
    %115 = arith.addf %112, %114 : vector<16x32xf32>
    %c0_33 = arith.constant 0 : index
    %c0_34 = arith.constant 0 : index
    %116 = vector.load %arg6[%c0_33, %c0_34] : memref<32x64xf32, #tpu.memory_space<vmem>>, vector<32x64xf32>
    %cst_35 = arith.constant dense<0.000000e+00> : vector<16x64xf32>
    %117 = tpu.matmul %115, %116, %cst_35 {dimension_numbers = #tpu.dot_dimension_numbers<[1], [0], [0], [1], [0, 0, 1, 1], [], []>} : vector<16x32xf32>, vector<32x64xf32>, vector<16x64xf32> -> vector<16x64xf32>
    %118 = vector.shape_cast %18 : vector<64xf32> to vector<1x64xf32>
    %119 = vector.broadcast %118 : vector<1x64xf32> to vector<16x64xf32>
    %120 = arith.addf %117, %119 : vector<16x64xf32>
    %cst_36 = arith.constant 0.000000e+00 : f32
    %121 = vector.broadcast %cst_36 : f32 to vector<16x64xf32>
    %122 = arith.maximumf %120, %121 : vector<16x64xf32>
    %c0_37 = arith.constant 0 : index
    %c0_38 = arith.constant 0 : index
    %123 = vector.load %arg7[%c0_37, %c0_38] : memref<64x32xf32, #tpu.memory_space<vmem>>, vector<64x32xf32>
    %cst_39 = arith.constant dense<0.000000e+00> : vector<16x32xf32>
    %124 = tpu.matmul %122, %123, %cst_39 {dimension_numbers = #tpu.dot_dimension_numbers<[1], [0], [0], [1], [0, 0, 1, 1], [], []>} : vector<16x64xf32>, vector<64x32xf32>, vector<16x32xf32> -> vector<16x32xf32>
    %125 = arith.addf %93, %124 : vector<16x32xf32>
    %126 = vector.shape_cast %20 : vector<32xf32> to vector<1x32xf32>
    %127 = vector.broadcast %126 : vector<1x32xf32> to vector<16x32xf32>
    %128 = arith.addf %125, %127 : vector<16x32xf32>
    %c0_40 = arith.constant 0 : index
    %c0_41 = arith.constant 0 : index
    %c0_42 = arith.constant 0 : index
    %129 = vector.load %arg8[%c0_40, %c0_41, %c0_42] : memref<1x16x32xf32, #tpu.memory_space<vmem>>, vector<1x16x32xf32>
    %130 = vector.shape_cast %129 : vector<1x16x32xf32> to vector<16x32xf32>
    %131 = vector.shape_cast %128 : vector<16x32xf32> to vector<1x16x32xf32>
    tpu.vector_store %arg8[%c0_40, %c0_41, %c0_42], %131 {strides = array<i32>} : memref<1x16x32xf32, #tpu.memory_space<vmem>>, vector<1x16x32xf32>,
    return
  }
  func.func @transform_0(%arg0: i32) -> (i32, i32, i32) {
    %c0_i32 = arith.constant 0 : i32
    %c0_i32_0 = arith.constant 0 : i32
    %c0_i32_1 = arith.constant 0 : i32
    return %arg0, %c0_i32, %c0_i32_0 : i32, i32, i32
  }
  func.func @transform_1(%arg0: i32) -> (i32, i32, i32) {
    %c0_i32 = arith.constant 0 : i32
    %c0_i32_0 = arith.constant 0 : i32
    %c0_i32_1 = arith.constant 0 : i32
    return %arg0, %c0_i32, %c0_i32_0 : i32, i32, i32
  }
  func.func @transform_2(%arg0: i32) -> (i32, i32) {
    %c0_i32 = arith.constant 0 : i32
    %c0_i32_0 = arith.constant 0 : i32
    %c0_i32_1 = arith.constant 0 : i32
    return %c0_i32, %c0_i32_0 : i32, i32
  }
  func.func @transform_3(%arg0: i32) -> (i32, i32) {
    %c0_i32 = arith.constant 0 : i32
    %c0_i32_0 = arith.constant 0 : i32
    %c0_i32_1 = arith.constant 0 : i32
    return %c0_i32, %c0_i32_0 : i32, i32
  }
  func.func @transform_4(%arg0: i32) -> (i32, i32) {
    %c0_i32 = arith.constant 0 : i32
    %c0_i32_0 = arith.constant 0 : i32
    %c0_i32_1 = arith.constant 0 : i32
    return %c0_i32, %c0_i32_0 : i32, i32
  }
  func.func @transform_5(%arg0: i32) -> (i32, i32) {
    %c0_i32 = arith.constant 0 : i32
    %c0_i32_0 = arith.constant 0 : i32
    %c0_i32_1 = arith.constant 0 : i32
    return %c0_i32, %c0_i32_0 : i32, i32
  }
  func.func @transform_6(%arg0: i32) -> (i32, i32) {
    %c0_i32 = arith.constant 0 : i32
    %c0_i32_0 = arith.constant 0 : i32
    %c0_i32_1 = arith.constant 0 : i32
    return %c0_i32, %c0_i32_0 : i32, i32
  }
  func.func @transform_7(%arg0: i32) -> (i32, i32, i32) {
    %c0_i32 = arith.constant 0 : i32
    %c0_i32_0 = arith.constant 0 : i32
    %c0_i32_1 = arith.constant 0 : i32
    return %arg0, %c0_i32, %c0_i32_0 : i32, i32, i32
  }
}

</mosaic_0001>

<llo_original>
// kernel: encoder_layer.1
$region0: #{encoder_layer.1}
  #allocation0 [shape = 'u32[]', space=smem, size = 0x4, offset = 0x4, fixed_abs, tag = 'smem constant byte address 0x4 - core index']
  #allocation1 [shape = 'u32[144,128]{1,0:T(1,128)}', space=vmem, size = 0x12000, scoped, tag = 'internal scratch']
  %s0 = inlined_call_operand.vmem [shape: f32[1,16,32], index: 0, kind: input, shape index: {}]
  %s1 = inlined_call_operand.vmem [shape: f32[1,16,16], index: 1, kind: input, shape index: {}]
  %s2 = inlined_call_operand.vmem [shape: f32[8,128], index: 2, kind: input, shape index: {}]
  %s3 = inlined_call_operand.vmem [shape: f32[32,96], index: 3, kind: input, shape index: {}]
  %s4 = inlined_call_operand.vmem [shape: f32[32,32], index: 4, kind: input, shape index: {}]
  %s5 = inlined_call_operand.vmem [shape: f32[32,64], index: 5, kind: input, shape index: {}]
  %s6 = inlined_call_operand.vmem [shape: f32[64,32], index: 6, kind: input, shape index: {}]
  %s7 = inlined_call_operand.hbm [shape: f32[1,16,32], index: 7, kind: output, shape index: {}]
  %s8 = sld [smem:[#allocation0]]
  $region38: #{encoder_layer.1} parent=0
    _
  %s10 = ssub.s32 1, %s8
  %s11 = scalar_select 0, %s10, %s8
  $region1: #{encoder_layer.1} parent=0
    #allocation2 [shape = 'u8[8192]{0}', space=vmem, size = 0x2000, scoped, tag = 'output window, operand 0, single buffered']
    #allocation3 [shape = 's32[1]{0}', space=sflag, size = 0x4, scoped, tag = 'scoped memory for encoder_layer.1']
    %12 = vsyncpa [#allocation3], 0
    // Predicated region
    $region2: #{encoder_layer.1} parent=1 // pred_check
      _
    $region3: #{encoder_layer.1} parent=1 // pred_check_branch
      %14 = sbr.rel (0) target = $region5
    $region4: #{encoder_layer.1} parent=1 // pred_region
      _
    $region5: #{encoder_layer.1} parent=1 // pred_fallthru
      _
    // Predicated region
    $region6: #{encoder_layer.1} parent=1 // pred_check
      _
    $region7: #{encoder_layer.1} parent=1 // pred_check_branch
      %16 = sbr.rel (0) target = $region9
    $region8: #{encoder_layer.1} parent=1 // pred_region
      _
    $region9: #{encoder_layer.1} parent=1 // pred_fallthru
      _
    // Predicated region
    $region10: #{encoder_layer.1} parent=1 // pred_check
      _
    $region11: #{encoder_layer.1} parent=1 // pred_check_branch
      %18 = sbr.rel (0) target = $region13
    $region12: #{encoder_layer.1} parent=1 // pred_region
      _
    $region13: #{encoder_layer.1} parent=1 // pred_fallthru
      _
    // Predicated region
    $region14: #{encoder_layer.1} parent=1 // pred_check
      _
    $region15: #{encoder_layer.1} parent=1 // pred_check_branch
      %20 = sbr.rel (0) target = $region17
    $region16: #{encoder_layer.1} parent=1 // pred_region
      _
    $region17: #{encoder_layer.1} parent=1 // pred_fallthru
      _
    // Predicated region
    $region18: #{encoder_layer.1} parent=1 // pred_check
      _
    $region19: #{encoder_layer.1} parent=1 // pred_check_branch
      %22 = sbr.rel (0) target = $region21
    $region20: #{encoder_layer.1} parent=1 // pred_region
      _
    $region21: #{encoder_layer.1} parent=1 // pred_fallthru
      _
    // Predicated region
    $region22: #{encoder_layer.1} parent=1 // pred_check
      _
    $region23: #{encoder_layer.1} parent=1 // pred_check_branch
      %24 = sbr.rel (0) target = $region25
    $region24: #{encoder_layer.1} parent=1 // pred_region
      _
    $region25: #{encoder_layer.1} parent=1 // pred_fallthru
      _
    // Predicated region
    $region26: #{encoder_layer.1} parent=1 // pred_check
      _
    $region27: #{encoder_layer.1} parent=1 // pred_check_branch
      %26 = sbr.rel (0) target = $region29
    $region28: #{encoder_layer.1} parent=1 // pred_region
      _
    $region29: #{encoder_layer.1} parent=1 // pred_fallthru
      _
    %v27 = vld [vmem:[%s0] sm:$0xff]
    %v28 = vld [vmem:[%s0 + $0x8] sm:$0xff]
    %v29 = vld [vmem:[%s1] sm:$0xff]
    %v30 = vld [vmem:[%s1 + $0x8] sm:$0xff]
    %v31 = vld [vmem:[%s2] sm:$0xff]
    %vm32 = vcmask 261120
    %v33 = vsel %vm32, %v27, 0.0
    %34 = vadd.xlane.f32.xlu0 %v33
    %v35 = vpop.xlane.xlu0 %34
    %v36 = vsel %vm32, %v28, 0.0
    %37 = vadd.xlane.f32.xlu0 %v36
    %v38 = vpop.xlane.xlu0 %37
    %v39 = vrcp.pop 32.0
    %v40 = vmul.f32 %v35, %v39
    %v41 = vmul.f32 %v38, %v39
    %v42 = vsub.f32 %v27, %v40
    %v43 = vsub.f32 %v28, %v41
    %v44 = vmul.f32 %v42, %v42
    %v45 = vmul.f32 %v43, %v43
    %v46 = vsel %vm32, %v44, 0.0
    %47 = vadd.xlane.f32.xlu0 %v46
    %v48 = vpop.xlane.xlu0 %47
    %v49 = vsel %vm32, %v45, 0.0
    %50 = vadd.xlane.f32.xlu0 %v49
    %v51 = vpop.xlane.xlu0 %50
    %v52 = vrcp.pop 31.0
    %v53 = vmul.f32 %v48, %v52
    %v54 = vmul.f32 %v51, %v52
    %v55 = vlaneseq
    %v56 = vshrl.u32 %v55, 7
    %v57 = vsub.s32 0, %v56
    %v58 = vrot.slane %v31, %v57
    %v59 = vmul.f32 %v58, %v42
    %v60 = vmul.f32 %v58, %v43
    %v61 = vrsqrt.pop %v53
    %v62 = vmul.f32 %v53, %v61
    %vm63 = vcmp.eq.f32.partialorder %v53, inf
    %v64 = vsel %vm63, %v53, %v62
    %vm65 = vcmp.eq.f32.partialorder %v53, 0.0
    %v66 = vand.u32 %v53, 2147483648
    %v67 = vsel %vm65, %v66, %v64
    %v68 = vrsqrt.pop %v54
    %v69 = vmul.f32 %v54, %v68
    %vm70 = vcmp.eq.f32.partialorder %v54, inf
    %v71 = vsel %vm70, %v54, %v69
    %vm72 = vcmp.eq.f32.partialorder %v54, 0.0
    %v73 = vand.u32 %v54, 2147483648
    %v74 = vsel %vm72, %v73, %v71
    %v75 = vadd.f32 %v67, 1e-06
    %v76 = vadd.f32 %v74, 1e-06
    %v77 = vrcp.pop %v75
    %v78 = vmul.f32 %v59, %v77
    %v79 = vrcp.pop %v76
    %v80 = vmul.f32 %v60, %v79
    %v81 = vlaneseq
    %v82 = vshrl.u32 %v81, 7
    %v83 = vsub.s32 1, %v82
    %v84 = vrot.slane %v31, %v83
    %v85 = vadd.f32 %v78, %v84
    %v86 = vadd.f32 %v80, %v84
    %v87 = vld [vmem:[%s3] sm:$0xff]
    %v88 = vld [vmem:[%s3 + $0x8] sm:$0xff]
    %v89 = vld [vmem:[%s3 + $0x10] sm:$0xff]
    %v90 = vld [vmem:[%s3 + $0x18] sm:$0xff]
    %v91 = vlaneseq
    %v92 = vshrl.u32 %v91, 7
    %v93 = vsub.s32 2, %v92
    %v94 = vrot.slane %v31, %v93
    %v96 = vsel %vm32, %v85, 0
    %v99 = vsel %vm32, %v86, 0
    %101 = vmatprep.subr.mxu0 0.0
    %102 = vmatpush1.msra.mxu0 0.0
    %103 = vmatprep.subr.mxu0 0.0
    %104 = vmatpush1.msra.mxu0 0.0
    %105 = vmatprep.subr.mxu0 0.0
    %106 = vmatpush1.msra.mxu0 0.0
    %107 = vmatprep.subr.mxu0 0.0
    %108 = vmatpush1.msra.mxu0 0.0
    %109 = vmatprep.subr.mxu0 0.0
    %110 = vmatpush1.msra.mxu0 0.0
    %111 = vmatprep.subr.mxu0 0.0
    %112 = vmatpush1.msra.mxu0 0.0
    %113 = vmatprep.subr.mxu0 0.0
    %114 = vmatpush1.msra.mxu0 0.0
    %115 = vmatprep.subr.mxu0 0.0
    %116 = vmatpush1.msra.mxu0 0.0
    %117 = vmatprep.subr.mxu0 0.0
    %118 = vmatpush1.msra.mxu0 0.0
    %119 = vmatprep.subr.mxu0 0.0
    %120 = vmatpush1.msra.mxu0 0.0
    %121 = vmatprep.subr.mxu0 0.0
    %122 = vmatpush1.msra.mxu0 0.0
    %123 = vmatprep.subr.mxu0 0.0
    %124 = vmatpush1.msra.mxu0 0.0
    %125 = vmatprep.subr.mxu0 0.0
    %126 = vmatpush1.msra.mxu0 %v90
    %127 = vmatprep.subr.mxu0 0.0
    %128 = vmatpush1.msra.mxu0 %v89
    %129 = vmatprep.subr.mxu0 0.0
    %130 = vmatpush1.msra.mxu0 %v88
    %131 = vmatprep.subr.mxu0 0.0
    %132 = vmatpush1.msra.mxu0 %v87
    %133 = vmatprep.subr.mxu0 0.0
    %134 = vmatpush2.msra.mxu0 0.0
    %135 = vmatprep.subr.mxu0 0.0
    %136 = vmatpush2.msra.mxu0 0.0
    %137 = vmatprep.subr.mxu0 0.0
    %138 = vmatpush2.msra.mxu0 0.0
    %139 = vmatprep.subr.mxu0 0.0
    %140 = vmatpush2.msra.mxu0 0.0
    %141 = vmatprep.subr.mxu0 0.0
    %142 = vmatpush2.msra.mxu0 0.0
    %143 = vmatprep.subr.mxu0 0.0
    %144 = vmatpush2.msra.mxu0 0.0
    %145 = vmatprep.subr.mxu0 0.0
    %146 = vmatpush2.msra.mxu0 0.0
    %147 = vmatprep.subr.mxu0 0.0
    %148 = vmatpush2.msra.mxu0 0.0
    %149 = vmatprep.subr.mxu0 0.0
    %150 = vmatpush2.msra.mxu0 0.0
    %151 = vmatprep.subr.mxu0 0.0
    %152 = vmatpush2.msra.mxu0 0.0
    %153 = vmatprep.subr.mxu0 0.0
    %154 = vmatpush2.msra.mxu0 0.0
    %155 = vmatprep.subr.mxu0 0.0
    %156 = vmatpush2.msra.mxu0 0.0
    %157 = vmatprep.subr.mxu0 0.0
    %158 = vmatpush2.msra.mxu0 0.0
    %159 = vmatprep.subr.mxu0 0.0
    %160 = vmatpush2.msra.mxu0 0.0
    %161 = vmatprep.subr.mxu0 0.0
    %162 = vmatpush2.msra.mxu0 0.0
    %163 = vmatprep.subr.mxu0 0.0
    %164 = vmatpush2.msra.mxu0 0.0
    %165 = vmatprep.mubr.f32.mxu0 0.0
    %166 = vmatmul.mubr.f32.gmra.mxu0 %v96
    %v167 = vpop.f32.mrf.mxu0
    %v168 = vadd.f32 %v94, %v167
    %v169 = vpop.f32.mrf.mxu0
    %170 = vmatprep.mubr.f32.mxu0 0.0
    %171 = vmatmul.mubr.f32.gmra.mxu0 %v99
    %v172 = vpop.f32.mrf.mxu0
    %v173 = vadd.f32 %v94, %v172
    %v174 = vpop.f32.mrf.mxu0
    %175 = vdwg.mxu0
    %178 = vrot.lane.b32.xlu0 %v168, 96
    %v179 = vpop.permute.xlu0 %178
    %180 = vrot.lane.b32.xlu0 %v173, 96
    %v181 = vpop.permute.xlu0 %180
    %vm182 = vcmask 64512
    %v183 = vsel %vm182, %v168, 0
    %v185 = vsel %vm182, %v173, 0
    %v187 = vsel %vm182, %v179, 0
    %v189 = vsel %vm182, %v181, 0
    %191 = vmatprep.subr.mxu0 0.0
    %192 = vmatpush1.xpose.msra.mxu0 0.0
    %193 = vmatprep.subr.mxu0 0.0
    %194 = vmatpush1.xpose.msra.mxu0 0.0
    %195 = vmatprep.subr.mxu0 0.0
    %196 = vmatpush1.xpose.msra.mxu0 0.0
    %197 = vmatprep.subr.mxu0 0.0
    %198 = vmatpush1.xpose.msra.mxu0 0.0
    %199 = vmatprep.subr.mxu0 0.0
    %200 = vmatpush1.xpose.msra.mxu0 0.0
    %201 = vmatprep.subr.mxu0 0.0
    %202 = vmatpush1.xpose.msra.mxu0 0.0
    %203 = vmatprep.subr.mxu0 0.0
    %204 = vmatpush1.xpose.msra.mxu0 0.0
    %205 = vmatprep.subr.mxu0 0.0
    %206 = vmatpush1.xpose.msra.mxu0 0.0
    %207 = vmatprep.subr.mxu0 0.0
    %208 = vmatpush1.xpose.msra.mxu0 0.0
    %209 = vmatprep.subr.mxu0 0.0
    %210 = vmatpush1.xpose.msra.mxu0 0.0
    %211 = vmatprep.subr.mxu0 0.0
    %212 = vmatpush1.xpose.msra.mxu0 0.0
    %213 = vmatprep.subr.mxu0 0.0
    %214 = vmatpush1.xpose.msra.mxu0 0.0
    %215 = vmatprep.subr.mxu0 0.0
    %216 = vmatpush1.xpose.msra.mxu0 0.0
    %217 = vmatprep.subr.mxu0 0.0
    %218 = vmatpush1.xpose.msra.mxu0 0.0
    %219 = vmatprep.subr.mxu0 0.0
    %220 = vmatpush1.xpose.msra.mxu0 %v189
    %221 = vmatprep.subr.mxu0 0.0
    %222 = vmatpush1.xpose.msra.mxu0 %v187
    %223 = vmatprep.subr.mxu0 0.0
    %224 = vmatpush2.xpose.msra.mxu0 0.0
    %225 = vmatprep.subr.mxu0 0.0
    %226 = vmatpush2.xpose.msra.mxu0 0.0
    %227 = vmatprep.subr.mxu0 0.0
    %228 = vmatpush2.xpose.msra.mxu0 0.0
    %229 = vmatprep.subr.mxu0 0.0
    %230 = vmatpush2.xpose.msra.mxu0 0.0
    %231 = vmatprep.subr.mxu0 0.0
    %232 = vmatpush2.xpose.msra.mxu0 0.0
    %233 = vmatprep.subr.mxu0 0.0
    %234 = vmatpush2.xpose.msra.mxu0 0.0
    %235 = vmatprep.subr.mxu0 0.0
    %236 = vmatpush2.xpose.msra.mxu0 0.0
    %237 = vmatprep.subr.mxu0 0.0
    %238 = vmatpush2.xpose.msra.mxu0 0.0
    %239 = vmatprep.subr.mxu0 0.0
    %240 = vmatpush2.xpose.msra.mxu0 0.0
    %241 = vmatprep.subr.mxu0 0.0
    %242 = vmatpush2.xpose.msra.mxu0 0.0
    %243 = vmatprep.subr.mxu0 0.0
    %244 = vmatpush2.xpose.msra.mxu0 0.0
    %245 = vmatprep.subr.mxu0 0.0
    %246 = vmatpush2.xpose.msra.mxu0 0.0
    %247 = vmatprep.subr.mxu0 0.0
    %248 = vmatpush2.xpose.msra.mxu0 0.0
    %249 = vmatprep.subr.mxu0 0.0
    %250 = vmatpush2.xpose.msra.mxu0 0.0
    %251 = vmatprep.subr.mxu0 0.0
    %252 = vmatpush2.xpose.msra.mxu0 0.0
    %253 = vmatprep.subr.mxu0 0.0
    %254 = vmatpush2.xpose.msra.mxu0 0.0
    %255 = vmatprep.mubr.f32.mxu0 0.0
    %256 = vmatmul.mubr.f32.gmra.mxu0 %v183
    %v257 = vpop.f32.mrf.mxu0
    %v258 = vadd.f32 0.0, %v257
    %v259 = vpop.f32.mrf.mxu0
    %260 = vmatprep.mubr.f32.mxu0 0.0
    %261 = vmatmul.mubr.f32.gmra.mxu0 %v185
    %v262 = vpop.f32.mrf.mxu0
    %v263 = vadd.f32 0.0, %v262
    %v264 = vpop.f32.mrf.mxu0
    %265 = vdwg.mxu0
    %266 = vrot.lane.b32.xlu0 %v168, 120
    %v267 = vpop.permute.xlu0 %266
    %268 = vrot.lane.b32.xlu0 %v173, 120
    %v269 = vpop.permute.xlu0 %268
    %270 = vrot.lane.b32.xlu0 %v168, 88
    %v271 = vpop.permute.xlu0 %270
    %272 = vrot.lane.b32.xlu0 %v173, 88
    %v273 = vpop.permute.xlu0 %272
    %v274 = vsel %vm182, %v267, 0
    %v276 = vsel %vm182, %v269, 0
    %v278 = vsel %vm182, %v271, 0
    %v280 = vsel %vm182, %v273, 0
    %282 = vmatprep.subr.mxu0 0.0
    %283 = vmatpush1.xpose.msra.mxu0 0.0
    %284 = vmatprep.subr.mxu0 0.0
    %285 = vmatpush1.xpose.msra.mxu0 0.0
    %286 = vmatprep.subr.mxu0 0.0
    %287 = vmatpush1.xpose.msra.mxu0 0.0
    %288 = vmatprep.subr.mxu0 0.0
    %289 = vmatpush1.xpose.msra.mxu0 0.0
    %290 = vmatprep.subr.mxu0 0.0
    %291 = vmatpush1.xpose.msra.mxu0 0.0
    %292 = vmatprep.subr.mxu0 0.0
    %293 = vmatpush1.xpose.msra.mxu0 0.0
    %294 = vmatprep.subr.mxu0 0.0
    %295 = vmatpush1.xpose.msra.mxu0 0.0
    %296 = vmatprep.subr.mxu0 0.0
    %297 = vmatpush1.xpose.msra.mxu0 0.0
    %298 = vmatprep.subr.mxu0 0.0
    %299 = vmatpush1.xpose.msra.mxu0 0.0
    %300 = vmatprep.subr.mxu0 0.0
    %301 = vmatpush1.xpose.msra.mxu0 0.0
    %302 = vmatprep.subr.mxu0 0.0
    %303 = vmatpush1.xpose.msra.mxu0 0.0
    %304 = vmatprep.subr.mxu0 0.0
    %305 = vmatpush1.xpose.msra.mxu0 0.0
    %306 = vmatprep.subr.mxu0 0.0
    %307 = vmatpush1.xpose.msra.mxu0 0.0
    %308 = vmatprep.subr.mxu0 0.0
    %309 = vmatpush1.xpose.msra.mxu0 0.0
    %310 = vmatprep.subr.mxu0 0.0
    %311 = vmatpush1.xpose.msra.mxu0 %v280
    %312 = vmatprep.subr.mxu0 0.0
    %313 = vmatpush1.xpose.msra.mxu0 %v278
    %314 = vmatprep.subr.mxu0 0.0
    %315 = vmatpush2.xpose.msra.mxu0 0.0
    %316 = vmatprep.subr.mxu0 0.0
    %317 = vmatpush2.xpose.msra.mxu0 0.0
    %318 = vmatprep.subr.mxu0 0.0
    %319 = vmatpush2.xpose.msra.mxu0 0.0
    %320 = vmatprep.subr.mxu0 0.0
    %321 = vmatpush2.xpose.msra.mxu0 0.0
    %322 = vmatprep.subr.mxu0 0.0
    %323 = vmatpush2.xpose.msra.mxu0 0.0
    %324 = vmatprep.subr.mxu0 0.0
    %325 = vmatpush2.xpose.msra.mxu0 0.0
    %326 = vmatprep.subr.mxu0 0.0
    %327 = vmatpush2.xpose.msra.mxu0 0.0
    %328 = vmatprep.subr.mxu0 0.0
    %329 = vmatpush2.xpose.msra.mxu0 0.0
    %330 = vmatprep.subr.mxu0 0.0
    %331 = vmatpush2.xpose.msra.mxu0 0.0
    %332 = vmatprep.subr.mxu0 0.0
    %333 = vmatpush2.xpose.msra.mxu0 0.0
    %334 = vmatprep.subr.mxu0 0.0
    %335 = vmatpush2.xpose.msra.mxu0 0.0
    %336 = vmatprep.subr.mxu0 0.0
    %337 = vmatpush2.xpose.msra.mxu0 0.0
    %338 = vmatprep.subr.mxu0 0.0
    %339 = vmatpush2.xpose.msra.mxu0 0.0
    %340 = vmatprep.subr.mxu0 0.0
    %341 = vmatpush2.xpose.msra.mxu0 0.0
    %342 = vmatprep.subr.mxu0 0.0
    %343 = vmatpush2.xpose.msra.mxu0 0.0
    %344 = vmatprep.subr.mxu0 0.0
    %345 = vmatpush2.xpose.msra.mxu0 0.0
    %346 = vmatprep.mubr.f32.mxu0 0.0
    %347 = vmatmul.mubr.f32.gmra.mxu0 %v274
    %v348 = vpop.f32.mrf.mxu0
    %v349 = vadd.f32 0.0, %v348
    %v350 = vpop.f32.mrf.mxu0
    %351 = vmatprep.mubr.f32.mxu0 0.0
    %352 = vmatmul.mubr.f32.gmra.mxu0 %v276
    %v353 = vpop.f32.mrf.mxu0
    %v354 = vadd.f32 0.0, %v353
    %v355 = vpop.f32.mrf.mxu0
    %356 = vdwg.mxu0
    %357 = vrot.lane.b32.xlu0 %v168, 112
    %v358 = vpop.permute.xlu0 %357
    %359 = vrot.lane.b32.xlu0 %v173, 112
    %v360 = vpop.permute.xlu0 %359
    %361 = vrot.lane.b32.xlu0 %v168, 80
    %v362 = vpop.permute.xlu0 %361
    %363 = vrot.lane.b32.xlu0 %v173, 80
    %v364 = vpop.permute.xlu0 %363
    %v365 = vsel %vm182, %v358, 0
    %v367 = vsel %vm182, %v360, 0
    %v369 = vsel %vm182, %v362, 0
    %v371 = vsel %vm182, %v364, 0
    %373 = vmatprep.subr.mxu0 0.0
    %374 = vmatpush1.xpose.msra.mxu0 0.0
    %375 = vmatprep.subr.mxu0 0.0
    %376 = vmatpush1.xpose.msra.mxu0 0.0
    %377 = vmatprep.subr.mxu0 0.0
    %378 = vmatpush1.xpose.msra.mxu0 0.0
    %379 = vmatprep.subr.mxu0 0.0
    %380 = vmatpush1.xpose.msra.mxu0 0.0
    %381 = vmatprep.subr.mxu0 0.0
    %382 = vmatpush1.xpose.msra.mxu0 0.0
    %383 = vmatprep.subr.mxu0 0.0
    %384 = vmatpush1.xpose.msra.mxu0 0.0
    %385 = vmatprep.subr.mxu0 0.0
    %386 = vmatpush1.xpose.msra.mxu0 0.0
    %387 = vmatprep.subr.mxu0 0.0
    %388 = vmatpush1.xpose.msra.mxu0 0.0
    %389 = vmatprep.subr.mxu0 0.0
    %390 = vmatpush1.xpose.msra.mxu0 0.0
    %391 = vmatprep.subr.mxu0 0.0
    %392 = vmatpush1.xpose.msra.mxu0 0.0
    %393 = vmatprep.subr.mxu0 0.0
    %394 = vmatpush1.xpose.msra.mxu0 0.0
    %395 = vmatprep.subr.mxu0 0.0
    %396 = vmatpush1.xpose.msra.mxu0 0.0
    %397 = vmatprep.subr.mxu0 0.0
    %398 = vmatpush1.xpose.msra.mxu0 0.0
    %399 = vmatprep.subr.mxu0 0.0
    %400 = vmatpush1.xpose.msra.mxu0 0.0
    %401 = vmatprep.subr.mxu0 0.0
    %402 = vmatpush1.xpose.msra.mxu0 %v371
    %403 = vmatprep.subr.mxu0 0.0
    %404 = vmatpush1.xpose.msra.mxu0 %v369
    %405 = vmatprep.subr.mxu0 0.0
    %406 = vmatpush2.xpose.msra.mxu0 0.0
    %407 = vmatprep.subr.mxu0 0.0
    %408 = vmatpush2.xpose.msra.mxu0 0.0
    %409 = vmatprep.subr.mxu0 0.0
    %410 = vmatpush2.xpose.msra.mxu0 0.0
    %411 = vmatprep.subr.mxu0 0.0
    %412 = vmatpush2.xpose.msra.mxu0 0.0
    %413 = vmatprep.subr.mxu0 0.0
    %414 = vmatpush2.xpose.msra.mxu0 0.0
    %415 = vmatprep.subr.mxu0 0.0
    %416 = vmatpush2.xpose.msra.mxu0 0.0
    %417 = vmatprep.subr.mxu0 0.0
    %418 = vmatpush2.xpose.msra.mxu0 0.0
    %419 = vmatprep.subr.mxu0 0.0
    %420 = vmatpush2.xpose.msra.mxu0 0.0
    %421 = vmatprep.subr.mxu0 0.0
    %422 = vmatpush2.xpose.msra.mxu0 0.0
    %423 = vmatprep.subr.mxu0 0.0
    %424 = vmatpush2.xpose.msra.mxu0 0.0
    %425 = vmatprep.subr.mxu0 0.0
    %426 = vmatpush2.xpose.msra.mxu0 0.0
    %427 = vmatprep.subr.mxu0 0.0
    %428 = vmatpush2.xpose.msra.mxu0 0.0
    %429 = vmatprep.subr.mxu0 0.0
    %430 = vmatpush2.xpose.msra.mxu0 0.0
    %431 = vmatprep.subr.mxu0 0.0
    %432 = vmatpush2.xpose.msra.mxu0 0.0
    %433 = vmatprep.subr.mxu0 0.0
    %434 = vmatpush2.xpose.msra.mxu0 0.0
    %435 = vmatprep.subr.mxu0 0.0
    %436 = vmatpush2.xpose.msra.mxu0 0.0
    %437 = vmatprep.mubr.f32.mxu0 0.0
    %438 = vmatmul.mubr.f32.gmra.mxu0 %v365
    %v439 = vpop.f32.mrf.mxu0
    %v440 = vadd.f32 0.0, %v439
    %v441 = vpop.f32.mrf.mxu0
    %442 = vmatprep.mubr.f32.mxu0 0.0
    %443 = vmatmul.mubr.f32.gmra.mxu0 %v367
    %v444 = vpop.f32.mrf.mxu0
    %v445 = vadd.f32 0.0, %v444
    %v446 = vpop.f32.mrf.mxu0
    %447 = vdwg.mxu0
    %448 = vrot.lane.b32.xlu0 %v168, 104
    %v449 = vpop.permute.xlu0 %448
    %450 = vrot.lane.b32.xlu0 %v173, 104
    %v451 = vpop.permute.xlu0 %450
    %452 = vrot.lane.b32.xlu0 %v168, 72
    %v453 = vpop.permute.xlu0 %452
    %454 = vrot.lane.b32.xlu0 %v173, 72
    %v455 = vpop.permute.xlu0 %454
    %v456 = vsel %vm182, %v449, 0
    %v458 = vsel %vm182, %v451, 0
    %v460 = vsel %vm182, %v453, 0
    %v462 = vsel %vm182, %v455, 0
    %464 = vmatprep.subr.mxu0 0.0
    %465 = vmatpush1.xpose.msra.mxu0 0.0
    %466 = vmatprep.subr.mxu0 0.0
    %467 = vmatpush1.xpose.msra.mxu0 0.0
    %468 = vmatprep.subr.mxu0 0.0
    %469 = vmatpush1.xpose.msra.mxu0 0.0
    %470 = vmatprep.subr.mxu0 0.0
    %471 = vmatpush1.xpose.msra.mxu0 0.0
    %472 = vmatprep.subr.mxu0 0.0
    %473 = vmatpush1.xpose.msra.mxu0 0.0
    %474 = vmatprep.subr.mxu0 0.0
    %475 = vmatpush1.xpose.msra.mxu0 0.0
    %476 = vmatprep.subr.mxu0 0.0
    %477 = vmatpush1.xpose.msra.mxu0 0.0
    %478 = vmatprep.subr.mxu0 0.0
    %479 = vmatpush1.xpose.msra.mxu0 0.0
    %480 = vmatprep.subr.mxu0 0.0
    %481 = vmatpush1.xpose.msra.mxu0 0.0
    %482 = vmatprep.subr.mxu0 0.0
    %483 = vmatpush1.xpose.msra.mxu0 0.0
    %484 = vmatprep.subr.mxu0 0.0
    %485 = vmatpush1.xpose.msra.mxu0 0.0
    %486 = vmatprep.subr.mxu0 0.0
    %487 = vmatpush1.xpose.msra.mxu0 0.0
    %488 = vmatprep.subr.mxu0 0.0
    %489 = vmatpush1.xpose.msra.mxu0 0.0
    %490 = vmatprep.subr.mxu0 0.0
    %491 = vmatpush1.xpose.msra.mxu0 0.0
    %492 = vmatprep.subr.mxu0 0.0
    %493 = vmatpush1.xpose.msra.mxu0 %v462
    %494 = vmatprep.subr.mxu0 0.0
    %495 = vmatpush1.xpose.msra.mxu0 %v460
    %496 = vmatprep.subr.mxu0 0.0
    %497 = vmatpush2.xpose.msra.mxu0 0.0
    %498 = vmatprep.subr.mxu0 0.0
    %499 = vmatpush2.xpose.msra.mxu0 0.0
    %500 = vmatprep.subr.mxu0 0.0
    %501 = vmatpush2.xpose.msra.mxu0 0.0
    %502 = vmatprep.subr.mxu0 0.0
    %503 = vmatpush2.xpose.msra.mxu0 0.0
    %504 = vmatprep.subr.mxu0 0.0
    %505 = vmatpush2.xpose.msra.mxu0 0.0
    %506 = vmatprep.subr.mxu0 0.0
    %507 = vmatpush2.xpose.msra.mxu0 0.0
    %508 = vmatprep.subr.mxu0 0.0
    %509 = vmatpush2.xpose.msra.mxu0 0.0
    %510 = vmatprep.subr.mxu0 0.0
    %511 = vmatpush2.xpose.msra.mxu0 0.0
    %512 = vmatprep.subr.mxu0 0.0
    %513 = vmatpush2.xpose.msra.mxu0 0.0
    %514 = vmatprep.subr.mxu0 0.0
    %515 = vmatpush2.xpose.msra.mxu0 0.0
    %516 = vmatprep.subr.mxu0 0.0
    %517 = vmatpush2.xpose.msra.mxu0 0.0
    %518 = vmatprep.subr.mxu0 0.0
    %519 = vmatpush2.xpose.msra.mxu0 0.0
    %520 = vmatprep.subr.mxu0 0.0
    %521 = vmatpush2.xpose.msra.mxu0 0.0
    %522 = vmatprep.subr.mxu0 0.0
    %523 = vmatpush2.xpose.msra.mxu0 0.0
    %524 = vmatprep.subr.mxu0 0.0
    %525 = vmatpush2.xpose.msra.mxu0 0.0
    %526 = vmatprep.subr.mxu0 0.0
    %527 = vmatpush2.xpose.msra.mxu0 0.0
    %528 = vmatprep.mubr.f32.mxu0 0.0
    %529 = vmatmul.mubr.f32.gmra.mxu0 %v456
    %v530 = vpop.f32.mrf.mxu0
    %v531 = vadd.f32 0.0, %v530
    %v532 = vpop.f32.mrf.mxu0
    %533 = vmatprep.mubr.f32.mxu0 0.0
    %534 = vmatmul.mubr.f32.gmra.mxu0 %v458
    %v535 = vpop.f32.mrf.mxu0
    %v536 = vadd.f32 0.0, %v535
    %v537 = vpop.f32.mrf.mxu0
    %538 = vdwg.mxu0
    %v539 = vmul.f32 %v258, 0.35355338
    %v540 = vmul.f32 %v263, 0.35355338
    %v541 = vmul.f32 %v349, 0.35355338
    %v542 = vmul.f32 %v354, 0.35355338
    %v543 = vmul.f32 %v440, 0.35355338
    %v544 = vmul.f32 %v445, 0.35355338
    %v545 = vmul.f32 %v531, 0.35355338
    %v546 = vmul.f32 %v536, 0.35355338
    %v547 = vadd.f32 %v539, %v29
    %v548 = vadd.f32 %v540, %v30
    %v549 = vadd.f32 %v541, %v29
    %v550 = vadd.f32 %v542, %v30
    %v551 = vadd.f32 %v543, %v29
    %v552 = vadd.f32 %v544, %v30
    %v553 = vadd.f32 %v545, %v29
    %v554 = vadd.f32 %v546, %v30
    %vm555 = vcmask 130048
    %v556 = vsel %vm555, %v547, -inf
    %557 = vmax.xlane.f32.xlu0 %v556
    %v558 = vpop.xlane.xlu0 %557
    %v559 = vsel %vm555, %v548, -inf
    %560 = vmax.xlane.f32.xlu0 %v559
    %v561 = vpop.xlane.xlu0 %560
    %v562 = vsel %vm555, %v549, -inf
    %563 = vmax.xlane.f32.xlu0 %v562
    %v564 = vpop.xlane.xlu0 %563
    %v565 = vsel %vm555, %v550, -inf
    %566 = vmax.xlane.f32.xlu0 %v565
    %v567 = vpop.xlane.xlu0 %566
    %v568 = vsel %vm555, %v551, -inf
    %569 = vmax.xlane.f32.xlu0 %v568
    %v570 = vpop.xlane.xlu0 %569
    %v571 = vsel %vm555, %v552, -inf
    %572 = vmax.xlane.f32.xlu0 %v571
    %v573 = vpop.xlane.xlu0 %572
    %v574 = vsel %vm555, %v553, -inf
    %575 = vmax.xlane.f32.xlu0 %v574
    %v576 = vpop.xlane.xlu0 %575
    %v577 = vsel %vm555, %v554, -inf
    %578 = vmax.xlane.f32.xlu0 %v577
    %v579 = vpop.xlane.xlu0 %578
    %v580 = vsub.f32 %v547, %v558
    %v581 = vsub.f32 %v548, %v561
    %v582 = vsub.f32 %v549, %v564
    %v583 = vsub.f32 %v550, %v567
    %v584 = vsub.f32 %v551, %v570
    %v585 = vsub.f32 %v552, %v573
    %v586 = vsub.f32 %v553, %v576
    %v587 = vsub.f32 %v554, %v579
    %v588 = vmul.f32 %v580, 1.442695
    %v589 = vpow.pop %v588
    %v590 = vmul.f32 %v581, 1.442695
    %v591 = vpow.pop %v590
    %v592 = vmul.f32 %v582, 1.442695
    %v593 = vpow.pop %v592
    %v594 = vmul.f32 %v583, 1.442695
    %v595 = vpow.pop %v594
    %v596 = vmul.f32 %v584, 1.442695
    %v597 = vpow.pop %v596
    %v598 = vmul.f32 %v585, 1.442695
    %v599 = vpow.pop %v598
    %v600 = vmul.f32 %v586, 1.442695
    %v601 = vpow.pop %v600
    %v602 = vmul.f32 %v587, 1.442695
    %v603 = vpow.pop %v602
    %v604 = vsel %vm555, %v589, 0.0
    %605 = vadd.xlane.f32.xlu0 %v604
    %v606 = vpop.xlane.xlu0 %605
    %v607 = vsel %vm555, %v591, 0.0
    %608 = vadd.xlane.f32.xlu0 %v607
    %v609 = vpop.xlane.xlu0 %608
    %v610 = vsel %vm555, %v593, 0.0
    %611 = vadd.xlane.f32.xlu0 %v610
    %v612 = vpop.xlane.xlu0 %611
    %v613 = vsel %vm555, %v595, 0.0
    %614 = vadd.xlane.f32.xlu0 %v613
    %v615 = vpop.xlane.xlu0 %614
    %v616 = vsel %vm555, %v597, 0.0
    %617 = vadd.xlane.f32.xlu0 %v616
    %v618 = vpop.xlane.xlu0 %617
    %v619 = vsel %vm555, %v599, 0.0
    %620 = vadd.xlane.f32.xlu0 %v619
    %v621 = vpop.xlane.xlu0 %620
    %v622 = vsel %vm555, %v601, 0.0
    %623 = vadd.xlane.f32.xlu0 %v622
    %v624 = vpop.xlane.xlu0 %623
    %v625 = vsel %vm555, %v603, 0.0
    %626 = vadd.xlane.f32.xlu0 %v625
    %v627 = vpop.xlane.xlu0 %626
    %v628 = vrcp.pop %v606
    %v629 = vrcp.pop %v609
    %v630 = vrcp.pop %v612
    %v631 = vrcp.pop %v615
    %v632 = vrcp.pop %v618
    %v633 = vrcp.pop %v621
    %v634 = vrcp.pop %v624
    %v635 = vrcp.pop %v627
    %v636 = vmul.f32 %v589, %v628
    %v637 = vmul.f32 %v591, %v629
    %v638 = vmul.f32 %v593, %v630
    %v639 = vmul.f32 %v595, %v631
    %v640 = vmul.f32 %v597, %v632
    %v641 = vmul.f32 %v599, %v633
    %v642 = vmul.f32 %v601, %v634
    %v643 = vmul.f32 %v603, %v635
    %644 = vrot.lane.b32.xlu0 %v168, 64
    %v645 = vpop.permute.xlu0 %644
    %646 = vrot.lane.b32.xlu0 %v173, 64
    %v647 = vpop.permute.xlu0 %646
    %v651 = vsel %vm555, %v636, 0
    %v654 = vsel %vm555, %v637, 0
    %656 = vmatprep.subr.mxu0 0.0
    %657 = vmatpush1.msra.mxu0 0.0
    %658 = vmatprep.subr.mxu0 0.0
    %659 = vmatpush1.msra.mxu0 0.0
    %660 = vmatprep.subr.mxu0 0.0
    %661 = vmatpush1.msra.mxu0 0.0
    %662 = vmatprep.subr.mxu0 0.0
    %663 = vmatpush1.msra.mxu0 0.0
    %664 = vmatprep.subr.mxu0 0.0
    %665 = vmatpush1.msra.mxu0 0.0
    %666 = vmatprep.subr.mxu0 0.0
    %667 = vmatpush1.msra.mxu0 0.0
    %668 = vmatprep.subr.mxu0 0.0
    %669 = vmatpush1.msra.mxu0 0.0
    %670 = vmatprep.subr.mxu0 0.0
    %671 = vmatpush1.msra.mxu0 0.0
    %672 = vmatprep.subr.mxu0 0.0
    %673 = vmatpush1.msra.mxu0 0.0
    %674 = vmatprep.subr.mxu0 0.0
    %675 = vmatpush1.msra.mxu0 0.0
    %676 = vmatprep.subr.mxu0 0.0
    %677 = vmatpush1.msra.mxu0 0.0
    %678 = vmatprep.subr.mxu0 0.0
    %679 = vmatpush1.msra.mxu0 0.0
    %680 = vmatprep.subr.mxu0 0.0
    %681 = vmatpush1.msra.mxu0 0.0
    %682 = vmatprep.subr.mxu0 0.0
    %683 = vmatpush1.msra.mxu0 0.0
    %684 = vmatprep.subr.mxu0 0.0
    %685 = vmatpush1.msra.mxu0 %v647
    %686 = vmatprep.subr.mxu0 0.0
    %687 = vmatpush1.msra.mxu0 %v645
    %688 = vmatprep.subr.mxu0 0.0
    %689 = vmatpush2.msra.mxu0 0.0
    %690 = vmatprep.subr.mxu0 0.0
    %691 = vmatpush2.msra.mxu0 0.0
    %692 = vmatprep.subr.mxu0 0.0
    %693 = vmatpush2.msra.mxu0 0.0
    %694 = vmatprep.subr.mxu0 0.0
    %695 = vmatpush2.msra.mxu0 0.0
    %696 = vmatprep.subr.mxu0 0.0
    %697 = vmatpush2.msra.mxu0 0.0
    %698 = vmatprep.subr.mxu0 0.0
    %699 = vmatpush2.msra.mxu0 0.0
    %700 = vmatprep.subr.mxu0 0.0
    %701 = vmatpush2.msra.mxu0 0.0
    %702 = vmatprep.subr.mxu0 0.0
    %703 = vmatpush2.msra.mxu0 0.0
    %704 = vmatprep.subr.mxu0 0.0
    %705 = vmatpush2.msra.mxu0 0.0
    %706 = vmatprep.subr.mxu0 0.0
    %707 = vmatpush2.msra.mxu0 0.0
    %708 = vmatprep.subr.mxu0 0.0
    %709 = vmatpush2.msra.mxu0 0.0
    %710 = vmatprep.subr.mxu0 0.0
    %711 = vmatpush2.msra.mxu0 0.0
    %712 = vmatprep.subr.mxu0 0.0
    %713 = vmatpush2.msra.mxu0 0.0
    %714 = vmatprep.subr.mxu0 0.0
    %715 = vmatpush2.msra.mxu0 0.0
    %716 = vmatprep.subr.mxu0 0.0
    %717 = vmatpush2.msra.mxu0 0.0
    %718 = vmatprep.subr.mxu0 0.0
    %719 = vmatpush2.msra.mxu0 0.0
    %720 = vmatprep.mubr.f32.mxu0 0.0
    %721 = vmatmul.mubr.f32.gmra.mxu0 %v651
    %v722 = vpop.f32.mrf.mxu0
    %v723 = vadd.f32 0.0, %v722
    %v724 = vpop.f32.mrf.mxu0
    %725 = vmatprep.mubr.f32.mxu0 0.0
    %726 = vmatmul.mubr.f32.gmra.mxu0 %v654
    %v727 = vpop.f32.mrf.mxu0
    %v728 = vadd.f32 0.0, %v727
    %v729 = vpop.f32.mrf.mxu0
    %730 = vdwg.mxu0
    %731 = vrot.lane.b32.xlu0 %v168, 56
    %v732 = vpop.permute.xlu0 %731
    %733 = vrot.lane.b32.xlu0 %v173, 56
    %v734 = vpop.permute.xlu0 %733
    %v738 = vsel %vm555, %v638, 0
    %v741 = vsel %vm555, %v639, 0
    %743 = vmatprep.subr.mxu0 0.0
    %744 = vmatpush1.msra.mxu0 0.0
    %745 = vmatprep.subr.mxu0 0.0
    %746 = vmatpush1.msra.mxu0 0.0
    %747 = vmatprep.subr.mxu0 0.0
    %748 = vmatpush1.msra.mxu0 0.0
    %749 = vmatprep.subr.mxu0 0.0
    %750 = vmatpush1.msra.mxu0 0.0
    %751 = vmatprep.subr.mxu0 0.0
    %752 = vmatpush1.msra.mxu0 0.0
    %753 = vmatprep.subr.mxu0 0.0
    %754 = vmatpush1.msra.mxu0 0.0
    %755 = vmatprep.subr.mxu0 0.0
    %756 = vmatpush1.msra.mxu0 0.0
    %757 = vmatprep.subr.mxu0 0.0
    %758 = vmatpush1.msra.mxu0 0.0
    %759 = vmatprep.subr.mxu0 0.0
    %760 = vmatpush1.msra.mxu0 0.0
    %761 = vmatprep.subr.mxu0 0.0
    %762 = vmatpush1.msra.mxu0 0.0
    %763 = vmatprep.subr.mxu0 0.0
    %764 = vmatpush1.msra.mxu0 0.0
    %765 = vmatprep.subr.mxu0 0.0
    %766 = vmatpush1.msra.mxu0 0.0
    %767 = vmatprep.subr.mxu0 0.0
    %768 = vmatpush1.msra.mxu0 0.0
    %769 = vmatprep.subr.mxu0 0.0
    %770 = vmatpush1.msra.mxu0 0.0
    %771 = vmatprep.subr.mxu0 0.0
    %772 = vmatpush1.msra.mxu0 %v734
    %773 = vmatprep.subr.mxu0 0.0
    %774 = vmatpush1.msra.mxu0 %v732
    %775 = vmatprep.subr.mxu0 0.0
    %776 = vmatpush2.msra.mxu0 0.0
    %777 = vmatprep.subr.mxu0 0.0
    %778 = vmatpush2.msra.mxu0 0.0
    %779 = vmatprep.subr.mxu0 0.0
    %780 = vmatpush2.msra.mxu0 0.0
    %781 = vmatprep.subr.mxu0 0.0
    %782 = vmatpush2.msra.mxu0 0.0
    %783 = vmatprep.subr.mxu0 0.0
    %784 = vmatpush2.msra.mxu0 0.0
    %785 = vmatprep.subr.mxu0 0.0
    %786 = vmatpush2.msra.mxu0 0.0
    %787 = vmatprep.subr.mxu0 0.0
    %788 = vmatpush2.msra.mxu0 0.0
    %789 = vmatprep.subr.mxu0 0.0
    %790 = vmatpush2.msra.mxu0 0.0
    %791 = vmatprep.subr.mxu0 0.0
    %792 = vmatpush2.msra.mxu0 0.0
    %793 = vmatprep.subr.mxu0 0.0
    %794 = vmatpush2.msra.mxu0 0.0
    %795 = vmatprep.subr.mxu0 0.0
    %796 = vmatpush2.msra.mxu0 0.0
    %797 = vmatprep.subr.mxu0 0.0
    %798 = vmatpush2.msra.mxu0 0.0
    %799 = vmatprep.subr.mxu0 0.0
    %800 = vmatpush2.msra.mxu0 0.0
    %801 = vmatprep.subr.mxu0 0.0
    %802 = vmatpush2.msra.mxu0 0.0
    %803 = vmatprep.subr.mxu0 0.0
    %804 = vmatpush2.msra.mxu0 0.0
    %805 = vmatprep.subr.mxu0 0.0
    %806 = vmatpush2.msra.mxu0 0.0
    %807 = vmatprep.mubr.f32.mxu0 0.0
    %808 = vmatmul.mubr.f32.gmra.mxu0 %v738
    %v809 = vpop.f32.mrf.mxu0
    %v810 = vadd.f32 0.0, %v809
    %v811 = vpop.f32.mrf.mxu0
    %812 = vmatprep.mubr.f32.mxu0 0.0
    %813 = vmatmul.mubr.f32.gmra.mxu0 %v741
    %v814 = vpop.f32.mrf.mxu0
    %v815 = vadd.f32 0.0, %v814
    %v816 = vpop.f32.mrf.mxu0
    %817 = vdwg.mxu0
    %818 = vrot.lane.b32.xlu0 %v168, 48
    %v819 = vpop.permute.xlu0 %818
    %820 = vrot.lane.b32.xlu0 %v173, 48
    %v821 = vpop.permute.xlu0 %820
    %v825 = vsel %vm555, %v640, 0
    %v828 = vsel %vm555, %v641, 0
    %830 = vmatprep.subr.mxu0 0.0
    %831 = vmatpush1.msra.mxu0 0.0
    %832 = vmatprep.subr.mxu0 0.0
    %833 = vmatpush1.msra.mxu0 0.0
    %834 = vmatprep.subr.mxu0 0.0
    %835 = vmatpush1.msra.mxu0 0.0
    %836 = vmatprep.subr.mxu0 0.0
    %837 = vmatpush1.msra.mxu0 0.0
    %838 = vmatprep.subr.mxu0 0.0
    %839 = vmatpush1.msra.mxu0 0.0
    %840 = vmatprep.subr.mxu0 0.0
    %841 = vmatpush1.msra.mxu0 0.0
    %842 = vmatprep.subr.mxu0 0.0
    %843 = vmatpush1.msra.mxu0 0.0
    %844 = vmatprep.subr.mxu0 0.0
    %845 = vmatpush1.msra.mxu0 0.0
    %846 = vmatprep.subr.mxu0 0.0
    %847 = vmatpush1.msra.mxu0 0.0
    %848 = vmatprep.subr.mxu0 0.0
    %849 = vmatpush1.msra.mxu0 0.0
    %850 = vmatprep.subr.mxu0 0.0
    %851 = vmatpush1.msra.mxu0 0.0
    %852 = vmatprep.subr.mxu0 0.0
    %853 = vmatpush1.msra.mxu0 0.0
    %854 = vmatprep.subr.mxu0 0.0
    %855 = vmatpush1.msra.mxu0 0.0
    %856 = vmatprep.subr.mxu0 0.0
    %857 = vmatpush1.msra.mxu0 0.0
    %858 = vmatprep.subr.mxu0 0.0
    %859 = vmatpush1.msra.mxu0 %v821
    %860 = vmatprep.subr.mxu0 0.0
    %861 = vmatpush1.msra.mxu0 %v819
    %862 = vmatprep.subr.mxu0 0.0
    %863 = vmatpush2.msra.mxu0 0.0
    %864 = vmatprep.subr.mxu0 0.0
    %865 = vmatpush2.msra.mxu0 0.0
    %866 = vmatprep.subr.mxu0 0.0
    %867 = vmatpush2.msra.mxu0 0.0
    %868 = vmatprep.subr.mxu0 0.0
    %869 = vmatpush2.msra.mxu0 0.0
    %870 = vmatprep.subr.mxu0 0.0
    %871 = vmatpush2.msra.mxu0 0.0
    %872 = vmatprep.subr.mxu0 0.0
    %873 = vmatpush2.msra.mxu0 0.0
    %874 = vmatprep.subr.mxu0 0.0
    %875 = vmatpush2.msra.mxu0 0.0
    %876 = vmatprep.subr.mxu0 0.0
    %877 = vmatpush2.msra.mxu0 0.0
    %878 = vmatprep.subr.mxu0 0.0
    %879 = vmatpush2.msra.mxu0 0.0
    %880 = vmatprep.subr.mxu0 0.0
    %881 = vmatpush2.msra.mxu0 0.0
    %882 = vmatprep.subr.mxu0 0.0
    %883 = vmatpush2.msra.mxu0 0.0
    %884 = vmatprep.subr.mxu0 0.0
    %885 = vmatpush2.msra.mxu0 0.0
    %886 = vmatprep.subr.mxu0 0.0
    %887 = vmatpush2.msra.mxu0 0.0
    %888 = vmatprep.subr.mxu0 0.0
    %889 = vmatpush2.msra.mxu0 0.0
    %890 = vmatprep.subr.mxu0 0.0
    %891 = vmatpush2.msra.mxu0 0.0
    %892 = vmatprep.subr.mxu0 0.0
    %893 = vmatpush2.msra.mxu0 0.0
    %894 = vmatprep.mubr.f32.mxu0 0.0
    %895 = vmatmul.mubr.f32.gmra.mxu0 %v825
    %v896 = vpop.f32.mrf.mxu0
    %v897 = vadd.f32 0.0, %v896
    %v898 = vpop.f32.mrf.mxu0
    %899 = vmatprep.mubr.f32.mxu0 0.0
    %900 = vmatmul.mubr.f32.gmra.mxu0 %v828
    %v901 = vpop.f32.mrf.mxu0
    %v902 = vadd.f32 0.0, %v901
    %v903 = vpop.f32.mrf.mxu0
    %904 = vdwg.mxu0
    %905 = vrot.lane.b32.xlu0 %v168, 40
    %v906 = vpop.permute.xlu0 %905
    %907 = vrot.lane.b32.xlu0 %v173, 40
    %v908 = vpop.permute.xlu0 %907
    %v912 = vsel %vm555, %v642, 0
    %v915 = vsel %vm555, %v643, 0
    %917 = vmatprep.subr.mxu0 0.0
    %918 = vmatpush1.msra.mxu0 0.0
    %919 = vmatprep.subr.mxu0 0.0
    %920 = vmatpush1.msra.mxu0 0.0
    %921 = vmatprep.subr.mxu0 0.0
    %922 = vmatpush1.msra.mxu0 0.0
    %923 = vmatprep.subr.mxu0 0.0
    %924 = vmatpush1.msra.mxu0 0.0
    %925 = vmatprep.subr.mxu0 0.0
    %926 = vmatpush1.msra.mxu0 0.0
    %927 = vmatprep.subr.mxu0 0.0
    %928 = vmatpush1.msra.mxu0 0.0
    %929 = vmatprep.subr.mxu0 0.0
    %930 = vmatpush1.msra.mxu0 0.0
    %931 = vmatprep.subr.mxu0 0.0
    %932 = vmatpush1.msra.mxu0 0.0
    %933 = vmatprep.subr.mxu0 0.0
    %934 = vmatpush1.msra.mxu0 0.0
    %935 = vmatprep.subr.mxu0 0.0
    %936 = vmatpush1.msra.mxu0 0.0
    %937 = vmatprep.subr.mxu0 0.0
    %938 = vmatpush1.msra.mxu0 0.0
    %939 = vmatprep.subr.mxu0 0.0
    %940 = vmatpush1.msra.mxu0 0.0
    %941 = vmatprep.subr.mxu0 0.0
    %942 = vmatpush1.msra.mxu0 0.0
    %943 = vmatprep.subr.mxu0 0.0
    %944 = vmatpush1.msra.mxu0 0.0
    %945 = vmatprep.subr.mxu0 0.0
    %946 = vmatpush1.msra.mxu0 %v908
    %947 = vmatprep.subr.mxu0 0.0
    %948 = vmatpush1.msra.mxu0 %v906
    %949 = vmatprep.subr.mxu0 0.0
    %950 = vmatpush2.msra.mxu0 0.0
    %951 = vmatprep.subr.mxu0 0.0
    %952 = vmatpush2.msra.mxu0 0.0
    %953 = vmatprep.subr.mxu0 0.0
    %954 = vmatpush2.msra.mxu0 0.0
    %955 = vmatprep.subr.mxu0 0.0
    %956 = vmatpush2.msra.mxu0 0.0
    %957 = vmatprep.subr.mxu0 0.0
    %958 = vmatpush2.msra.mxu0 0.0
    %959 = vmatprep.subr.mxu0 0.0
    %960 = vmatpush2.msra.mxu0 0.0
    %961 = vmatprep.subr.mxu0 0.0
    %962 = vmatpush2.msra.mxu0 0.0
    %963 = vmatprep.subr.mxu0 0.0
    %964 = vmatpush2.msra.mxu0 0.0
    %965 = vmatprep.subr.mxu0 0.0
    %966 = vmatpush2.msra.mxu0 0.0
    %967 = vmatprep.subr.mxu0 0.0
    %968 = vmatpush2.msra.mxu0 0.0
    %969 = vmatprep.subr.mxu0 0.0
    %970 = vmatpush2.msra.mxu0 0.0
    %971 = vmatprep.subr.mxu0 0.0
    %972 = vmatpush2.msra.mxu0 0.0
    %973 = vmatprep.subr.mxu0 0.0
    %974 = vmatpush2.msra.mxu0 0.0
    %975 = vmatprep.subr.mxu0 0.0
    %976 = vmatpush2.msra.mxu0 0.0
    %977 = vmatprep.subr.mxu0 0.0
    %978 = vmatpush2.msra.mxu0 0.0
    %979 = vmatprep.subr.mxu0 0.0
    %980 = vmatpush2.msra.mxu0 0.0
    %981 = vmatprep.mubr.f32.mxu0 0.0
    %982 = vmatmul.mubr.f32.gmra.mxu0 %v912
    %v983 = vpop.f32.mrf.mxu0
    %v984 = vadd.f32 0.0, %v983
    %v985 = vpop.f32.mrf.mxu0
    %986 = vmatprep.mubr.f32.mxu0 0.0
    %987 = vmatmul.mubr.f32.gmra.mxu0 %v915
    %v988 = vpop.f32.mrf.mxu0
    %v989 = vadd.f32 0.0, %v988
    %v990 = vpop.f32.mrf.mxu0
    %991 = vdwg.mxu0
    %994 = vrot.lane.b32.xlu0 %v810, 8
    %v995 = vpop.permute.xlu0 %994
    %996 = vrot.lane.b32.xlu0 %v815, 8
    %v997 = vpop.permute.xlu0 %996
    %1002 = vrot.lane.b32.xlu0 %v897, 16
    %v1003 = vpop.permute.xlu0 %1002
    %1004 = vrot.lane.b32.xlu0 %v902, 16
    %v1005 = vpop.permute.xlu0 %1004
    %1010 = vrot.lane.b32.xlu0 %v984, 24
    %v1011 = vpop.permute.xlu0 %1010
    %1012 = vrot.lane.b32.xlu0 %v989, 24
    %v1013 = vpop.permute.xlu0 %1012
    %v1016 = vsel %vm182, %v723, %v995
    %v1017 = vsel %vm182, %v728, %v997
    %v1018 = vsel %vm555, %v1016, %v1003
    %v1019 = vsel %vm555, %v1017, %v1005
    %vm1020 = vcmask 195584
    %v1021 = vsel %vm1020, %v1018, %v1011
    %v1022 = vsel %vm1020, %v1019, %v1013
    %v1023 = vld [vmem:[%s4] sm:$0xff]
    %v1024 = vld [vmem:[%s4 + $0x8] sm:$0xff]
    %v1025 = vld [vmem:[%s4 + $0x10] sm:$0xff]
    %v1026 = vld [vmem:[%s4 + $0x18] sm:$0xff]
    %v1028 = vsel %vm32, %v1021, 0
    %v1031 = vsel %vm32, %v1022, 0
    %1033 = vmatprep.subr.mxu0 0.0
    %1034 = vmatpush1.msra.mxu0 0.0
    %1035 = vmatprep.subr.mxu0 0.0
    %1036 = vmatpush1.msra.mxu0 0.0
    %1037 = vmatprep.subr.mxu0 0.0
    %1038 = vmatpush1.msra.mxu0 0.0
    %1039 = vmatprep.subr.mxu0 0.0
    %1040 = vmatpush1.msra.mxu0 0.0
    %1041 = vmatprep.subr.mxu0 0.0
    %1042 = vmatpush1.msra.mxu0 0.0
    %1043 = vmatprep.subr.mxu0 0.0
    %1044 = vmatpush1.msra.mxu0 0.0
    %1045 = vmatprep.subr.mxu0 0.0
    %1046 = vmatpush1.msra.mxu0 0.0
    %1047 = vmatprep.subr.mxu0 0.0
    %1048 = vmatpush1.msra.mxu0 0.0
    %1049 = vmatprep.subr.mxu0 0.0
    %1050 = vmatpush1.msra.mxu0 0.0
    %1051 = vmatprep.subr.mxu0 0.0
    %1052 = vmatpush1.msra.mxu0 0.0
    %1053 = vmatprep.subr.mxu0 0.0
    %1054 = vmatpush1.msra.mxu0 0.0
    %1055 = vmatprep.subr.mxu0 0.0
    %1056 = vmatpush1.msra.mxu0 0.0
    %1057 = vmatprep.subr.mxu0 0.0
    %1058 = vmatpush1.msra.mxu0 %v1026
    %1059 = vmatprep.subr.mxu0 0.0
    %1060 = vmatpush1.msra.mxu0 %v1025
    %1061 = vmatprep.subr.mxu0 0.0
    %1062 = vmatpush1.msra.mxu0 %v1024
    %1063 = vmatprep.subr.mxu0 0.0
    %1064 = vmatpush1.msra.mxu0 %v1023
    %1065 = vmatprep.subr.mxu0 0.0
    %1066 = vmatpush2.msra.mxu0 0.0
    %1067 = vmatprep.subr.mxu0 0.0
    %1068 = vmatpush2.msra.mxu0 0.0
    %1069 = vmatprep.subr.mxu0 0.0
    %1070 = vmatpush2.msra.mxu0 0.0
    %1071 = vmatprep.subr.mxu0 0.0
    %1072 = vmatpush2.msra.mxu0 0.0
    %1073 = vmatprep.subr.mxu0 0.0
    %1074 = vmatpush2.msra.mxu0 0.0
    %1075 = vmatprep.subr.mxu0 0.0
    %1076 = vmatpush2.msra.mxu0 0.0
    %1077 = vmatprep.subr.mxu0 0.0
    %1078 = vmatpush2.msra.mxu0 0.0
    %1079 = vmatprep.subr.mxu0 0.0
    %1080 = vmatpush2.msra.mxu0 0.0
    %1081 = vmatprep.subr.mxu0 0.0
    %1082 = vmatpush2.msra.mxu0 0.0
    %1083 = vmatprep.subr.mxu0 0.0
    %1084 = vmatpush2.msra.mxu0 0.0
    %1085 = vmatprep.subr.mxu0 0.0
    %1086 = vmatpush2.msra.mxu0 0.0
    %1087 = vmatprep.subr.mxu0 0.0
    %1088 = vmatpush2.msra.mxu0 0.0
    %1089 = vmatprep.subr.mxu0 0.0
    %1090 = vmatpush2.msra.mxu0 0.0
    %1091 = vmatprep.subr.mxu0 0.0
    %1092 = vmatpush2.msra.mxu0 0.0
    %1093 = vmatprep.subr.mxu0 0.0
    %1094 = vmatpush2.msra.mxu0 0.0
    %1095 = vmatprep.subr.mxu0 0.0
    %1096 = vmatpush2.msra.mxu0 0.0
    %1097 = vmatprep.mubr.f32.mxu0 0.0
    %1098 = vmatmul.mubr.f32.gmra.mxu0 %v1028
    %v1099 = vpop.f32.mrf.mxu0
    %v1100 = vadd.f32 0.0, %v1099
    %v1101 = vpop.f32.mrf.mxu0
    %1102 = vmatprep.mubr.f32.mxu0 0.0
    %1103 = vmatmul.mubr.f32.gmra.mxu0 %v1031
    %v1104 = vpop.f32.mrf.mxu0
    %v1105 = vadd.f32 0.0, %v1104
    %v1106 = vpop.f32.mrf.mxu0
    %1107 = vdwg.mxu0
    %v1108 = vadd.f32 %v27, %v1100
    %v1109 = vadd.f32 %v28, %v1105
    %v1110 = vlaneseq
    %v1111 = vshrl.u32 %v1110, 7
    %v1112 = vsub.s32 3, %v1111
    %v1113 = vrot.slane %v31, %v1112
    %v1114 = vadd.f32 %v1108, %v1113
    %v1115 = vadd.f32 %v1109, %v1113
    %v1116 = vsel %vm32, %v1114, 0.0
    %1117 = vadd.xlane.f32.xlu0 %v1116
    %v1118 = vpop.xlane.xlu0 %1117
    %v1119 = vsel %vm32, %v1115, 0.0
    %1120 = vadd.xlane.f32.xlu0 %v1119
    %v1121 = vpop.xlane.xlu0 %1120
    %v1122 = vmul.f32 %v1118, %v39
    %v1123 = vmul.f32 %v1121, %v39
    %v1124 = vsub.f32 %v1114, %v1122
    %v1125 = vsub.f32 %v1115, %v1123
    %v1126 = vmul.f32 %v1124, %v1124
    %v1127 = vmul.f32 %v1125, %v1125
    %v1128 = vsel %vm32, %v1126, 0.0
    %1129 = vadd.xlane.f32.xlu0 %v1128
    %v1130 = vpop.xlane.xlu0 %1129
    %v1131 = vsel %vm32, %v1127, 0.0
    %1132 = vadd.xlane.f32.xlu0 %v1131
    %v1133 = vpop.xlane.xlu0 %1132
    %v1134 = vmul.f32 %v1130, %v52
    %v1135 = vmul.f32 %v1133, %v52
    %v1136 = vlaneseq
    %v1137 = vshrl.u32 %v1136, 7
    %v1138 = vsub.s32 4, %v1137
    %v1139 = vrot.slane %v31, %v1138
    %v1140 = vmul.f32 %v1139, %v1124
    %v1141 = vmul.f32 %v1139, %v1125
    %v1142 = vrsqrt.pop %v1134
    %v1143 = vmul.f32 %v1134, %v1142
    %vm1144 = vcmp.eq.f32.partialorder %v1134, inf
    %v1145 = vsel %vm1144, %v1134, %v1143
    %vm1146 = vcmp.eq.f32.partialorder %v1134, 0.0
    %v1147 = vand.u32 %v1134, 2147483648
    %v1148 = vsel %vm1146, %v1147, %v1145
    %v1149 = vrsqrt.pop %v1135
    %v1150 = vmul.f32 %v1135, %v1149
    %vm1151 = vcmp.eq.f32.partialorder %v1135, inf
    %v1152 = vsel %vm1151, %v1135, %v1150
    %vm1153 = vcmp.eq.f32.partialorder %v1135, 0.0
    %v1154 = vand.u32 %v1135, 2147483648
    %v1155 = vsel %vm1153, %v1154, %v1152
    %v1156 = vadd.f32 %v1148, 1e-06
    %v1157 = vadd.f32 %v1155, 1e-06
    %v1158 = vrcp.pop %v1156
    %v1159 = vmul.f32 %v1140, %v1158
    %v1160 = vrcp.pop %v1157
    %v1161 = vmul.f32 %v1141, %v1160
    %v1162 = vlaneseq
    %v1163 = vshrl.u32 %v1162, 7
    %v1164 = vsub.s32 5, %v1163
    %v1165 = vrot.slane %v31, %v1164
    %v1166 = vadd.f32 %v1159, %v1165
    %v1167 = vadd.f32 %v1161, %v1165
    %v1168 = vld [vmem:[%s5] sm:$0xff]
    %v1169 = vld [vmem:[%s5 + $0x8] sm:$0xff]
    %v1170 = vld [vmem:[%s5 + $0x10] sm:$0xff]
    %v1171 = vld [vmem:[%s5 + $0x18] sm:$0xff]
    %v1172 = vlaneseq
    %v1173 = vshrl.u32 %v1172, 7
    %v1174 = vsub.s32 6, %v1173
    %v1175 = vrot.slane %v31, %v1174
    %v1177 = vsel %vm32, %v1166, 0
    %v1180 = vsel %vm32, %v1167, 0
    %1182 = vmatprep.subr.mxu0 0.0
    %1183 = vmatpush1.msra.mxu0 0.0
    %1184 = vmatprep.subr.mxu0 0.0
    %1185 = vmatpush1.msra.mxu0 0.0
    %1186 = vmatprep.subr.mxu0 0.0
    %1187 = vmatpush1.msra.mxu0 0.0
    %1188 = vmatprep.subr.mxu0 0.0
    %1189 = vmatpush1.msra.mxu0 0.0
    %1190 = vmatprep.subr.mxu0 0.0
    %1191 = vmatpush1.msra.mxu0 0.0
    %1192 = vmatprep.subr.mxu0 0.0
    %1193 = vmatpush1.msra.mxu0 0.0
    %1194 = vmatprep.subr.mxu0 0.0
    %1195 = vmatpush1.msra.mxu0 0.0
    %1196 = vmatprep.subr.mxu0 0.0
    %1197 = vmatpush1.msra.mxu0 0.0
    %1198 = vmatprep.subr.mxu0 0.0
    %1199 = vmatpush1.msra.mxu0 0.0
    %1200 = vmatprep.subr.mxu0 0.0
    %1201 = vmatpush1.msra.mxu0 0.0
    %1202 = vmatprep.subr.mxu0 0.0
    %1203 = vmatpush1.msra.mxu0 0.0
    %1204 = vmatprep.subr.mxu0 0.0
    %1205 = vmatpush1.msra.mxu0 0.0
    %1206 = vmatprep.subr.mxu0 0.0
    %1207 = vmatpush1.msra.mxu0 %v1171
    %1208 = vmatprep.subr.mxu0 0.0
    %1209 = vmatpush1.msra.mxu0 %v1170
    %1210 = vmatprep.subr.mxu0 0.0
    %1211 = vmatpush1.msra.mxu0 %v1169
    %1212 = vmatprep.subr.mxu0 0.0
    %1213 = vmatpush1.msra.mxu0 %v1168
    %1214 = vmatprep.subr.mxu0 0.0
    %1215 = vmatpush2.msra.mxu0 0.0
    %1216 = vmatprep.subr.mxu0 0.0
    %1217 = vmatpush2.msra.mxu0 0.0
    %1218 = vmatprep.subr.mxu0 0.0
    %1219 = vmatpush2.msra.mxu0 0.0
    %1220 = vmatprep.subr.mxu0 0.0
    %1221 = vmatpush2.msra.mxu0 0.0
    %1222 = vmatprep.subr.mxu0 0.0
    %1223 = vmatpush2.msra.mxu0 0.0
    %1224 = vmatprep.subr.mxu0 0.0
    %1225 = vmatpush2.msra.mxu0 0.0
    %1226 = vmatprep.subr.mxu0 0.0
    %1227 = vmatpush2.msra.mxu0 0.0
    %1228 = vmatprep.subr.mxu0 0.0
    %1229 = vmatpush2.msra.mxu0 0.0
    %1230 = vmatprep.subr.mxu0 0.0
    %1231 = vmatpush2.msra.mxu0 0.0
    %1232 = vmatprep.subr.mxu0 0.0
    %1233 = vmatpush2.msra.mxu0 0.0
    %1234 = vmatprep.subr.mxu0 0.0
    %1235 = vmatpush2.msra.mxu0 0.0
    %1236 = vmatprep.subr.mxu0 0.0
    %1237 = vmatpush2.msra.mxu0 0.0
    %1238 = vmatprep.subr.mxu0 0.0
    %1239 = vmatpush2.msra.mxu0 0.0
    %1240 = vmatprep.subr.mxu0 0.0
    %1241 = vmatpush2.msra.mxu0 0.0
    %1242 = vmatprep.subr.mxu0 0.0
    %1243 = vmatpush2.msra.mxu0 0.0
    %1244 = vmatprep.subr.mxu0 0.0
    %1245 = vmatpush2.msra.mxu0 0.0
    %1246 = vmatprep.mubr.f32.mxu0 0.0
    %1247 = vmatmul.mubr.f32.gmra.mxu0 %v1177
    %v1248 = vpop.f32.mrf.mxu0
    %v1249 = vadd.f32 %v1175, %v1248
    %v1250 = vpop.f32.mrf.mxu0
    %1251 = vmatprep.mubr.f32.mxu0 0.0
    %1252 = vmatmul.mubr.f32.gmra.mxu0 %v1180
    %v1253 = vpop.f32.mrf.mxu0
    %v1254 = vadd.f32 %v1175, %v1253
    %v1255 = vpop.f32.mrf.mxu0
    %1256 = vdwg.mxu0
    %v1257 = vmax.f32 %v1249, 0.0
    %v1258 = vmax.f32 %v1254, 0.0
    %v1259 = vld [vmem:[%s6] sm:$0xff]
    %v1260 = vld [vmem:[%s6 + $0x8] sm:$0xff]
    %v1261 = vld [vmem:[%s6 + $0x10] sm:$0xff]
    %v1262 = vld [vmem:[%s6 + $0x18] sm:$0xff]
    %v1263 = vld [vmem:[%s6 + $0x20] sm:$0xff]
    %v1264 = vld [vmem:[%s6 + $0x28] sm:$0xff]
    %v1265 = vld [vmem:[%s6 + $0x30] sm:$0xff]
    %v1266 = vld [vmem:[%s6 + $0x38] sm:$0xff]
    %vm1267 = vcmask 523264
    %v1269 = vsel %vm1267, %v1257, 0
    %v1272 = vsel %vm1267, %v1258, 0
    %1274 = vmatprep.subr.mxu0 0.0
    %1275 = vmatpush1.msra.mxu0 0.0
    %1276 = vmatprep.subr.mxu0 0.0
    %1277 = vmatpush1.msra.mxu0 0.0
    %1278 = vmatprep.subr.mxu0 0.0
    %1279 = vmatpush1.msra.mxu0 0.0
    %1280 = vmatprep.subr.mxu0 0.0
    %1281 = vmatpush1.msra.mxu0 0.0
    %1282 = vmatprep.subr.mxu0 0.0
    %1283 = vmatpush1.msra.mxu0 0.0
    %1284 = vmatprep.subr.mxu0 0.0
    %1285 = vmatpush1.msra.mxu0 0.0
    %1286 = vmatprep.subr.mxu0 0.0
    %1287 = vmatpush1.msra.mxu0 0.0
    %1288 = vmatprep.subr.mxu0 0.0
    %1289 = vmatpush1.msra.mxu0 0.0
    %1290 = vmatprep.subr.mxu0 0.0
    %1291 = vmatpush1.msra.mxu0 %v1266
    %1292 = vmatprep.subr.mxu0 0.0
    %1293 = vmatpush1.msra.mxu0 %v1265
    %1294 = vmatprep.subr.mxu0 0.0
    %1295 = vmatpush1.msra.mxu0 %v1264
    %1296 = vmatprep.subr.mxu0 0.0
    %1297 = vmatpush1.msra.mxu0 %v1263
    %1298 = vmatprep.subr.mxu0 0.0
    %1299 = vmatpush1.msra.mxu0 %v1262
    %1300 = vmatprep.subr.mxu0 0.0
    %1301 = vmatpush1.msra.mxu0 %v1261
    %1302 = vmatprep.subr.mxu0 0.0
    %1303 = vmatpush1.msra.mxu0 %v1260
    %1304 = vmatprep.subr.mxu0 0.0
    %1305 = vmatpush1.msra.mxu0 %v1259
    %1306 = vmatprep.subr.mxu0 0.0
    %1307 = vmatpush2.msra.mxu0 0.0
    %1308 = vmatprep.subr.mxu0 0.0
    %1309 = vmatpush2.msra.mxu0 0.0
    %1310 = vmatprep.subr.mxu0 0.0
    %1311 = vmatpush2.msra.mxu0 0.0
    %1312 = vmatprep.subr.mxu0 0.0
    %1313 = vmatpush2.msra.mxu0 0.0
    %1314 = vmatprep.subr.mxu0 0.0
    %1315 = vmatpush2.msra.mxu0 0.0
    %1316 = vmatprep.subr.mxu0 0.0
    %1317 = vmatpush2.msra.mxu0 0.0
    %1318 = vmatprep.subr.mxu0 0.0
    %1319 = vmatpush2.msra.mxu0 0.0
    %1320 = vmatprep.subr.mxu0 0.0
    %1321 = vmatpush2.msra.mxu0 0.0
    %1322 = vmatprep.subr.mxu0 0.0
    %1323 = vmatpush2.msra.mxu0 0.0
    %1324 = vmatprep.subr.mxu0 0.0
    %1325 = vmatpush2.msra.mxu0 0.0
    %1326 = vmatprep.subr.mxu0 0.0
    %1327 = vmatpush2.msra.mxu0 0.0
    %1328 = vmatprep.subr.mxu0 0.0
    %1329 = vmatpush2.msra.mxu0 0.0
    %1330 = vmatprep.subr.mxu0 0.0
    %1331 = vmatpush2.msra.mxu0 0.0
    %1332 = vmatprep.subr.mxu0 0.0
    %1333 = vmatpush2.msra.mxu0 0.0
    %1334 = vmatprep.subr.mxu0 0.0
    %1335 = vmatpush2.msra.mxu0 0.0
    %1336 = vmatprep.subr.mxu0 0.0
    %1337 = vmatpush2.msra.mxu0 0.0
    %1338 = vmatprep.mubr.f32.mxu0 0.0
    %1339 = vmatmul.mubr.f32.gmra.mxu0 %v1269
    %v1340 = vpop.f32.mrf.mxu0
    %v1341 = vadd.f32 0.0, %v1340
    %v1342 = vpop.f32.mrf.mxu0
    %1343 = vmatprep.mubr.f32.mxu0 0.0
    %1344 = vmatmul.mubr.f32.gmra.mxu0 %v1272
    %v1345 = vpop.f32.mrf.mxu0
    %v1346 = vadd.f32 0.0, %v1345
    %v1347 = vpop.f32.mrf.mxu0
    %1348 = vdwg.mxu0
    %v1349 = vadd.f32 %v1114, %v1341
    %v1350 = vadd.f32 %v1115, %v1346
    %v1351 = vlaneseq
    %v1352 = vshrl.u32 %v1351, 7
    %v1353 = vsub.s32 7, %v1352
    %v1354 = vrot.slane %v31, %v1353
    %v1355 = vadd.f32 %v1349, %v1354
    %v1356 = vadd.f32 %v1350, %v1354
    %1357 = vst.msk [vmem:[#allocation2] sm:$0xff] %vm32, %v1355
    %1358 = vst.msk [vmem:[#allocation2 + $0x8] sm:$0xff] %vm32, %v1356
    // Predicated region
    $region30: #{encoder_layer.1} parent=1 // pred_check
      _
    $region31: #{encoder_layer.1} parent=1 // pred_check_branch
      %1360 = sbr.rel (0) target = $region33
    $region32: #{encoder_layer.1} parent=1 // pred_region
      %s1362 = ssub.s32 256, 256
      %1363 = vsyncadd [#allocation3], %s1362
      %s1364 = sshll.u32 [#allocation2], 4
      %s1365 = int_to_ptr.vmem [resolvable:$true] %s1364
      %1370 = dma.vmem_to_hbm [thread:$0]  %s1365, 256, %s7, [#allocation3], 128, 128, 8
    $region33: #{encoder_layer.1} parent=1 // pred_fallthru
      _
    // Predicated region
    $region34: #{encoder_layer.1} parent=1 // pred_check
      _
    $region35: #{encoder_layer.1} parent=1 // pred_check_branch
      %1372 = sbr.rel (0) target = $region37
    $region36: #{encoder_layer.1} parent=1 // pred_region
      %1373 = dma.done [#allocation3], 256
    $region37: #{encoder_layer.1} parent=1 // pred_fallthru
      _
    %1374 = vsyncpa [#allocation3], 1

</llo_original>
